<compile_context>
chip_gen: v5e
topology: v5e:2x2
jax: 0.10.0
libtpu: 0.0.40
codegen_flags: <defaults>
</compile_context>

<pallas_src>
import functools

import numpy as np
import jax
import jax.numpy as jnp
from jax.experimental import pallas as pl
from jax.experimental.pallas import tpu as pltpu


# ----------------------- Fused BiLSTM + Linear kernel -----------------------
def _bilstm_fused_kernel(x_ref, wih_ref, whh_ref, b_ref, wemb_ref, bemb_ref,
                         out_ref, xpf_ref, xpb_ref, *, T, B, H):
    # x_ref:    (T*B, D)        flattened input rows (shared by both dirs)
    # wih_ref:  (2, D, 4H)      fused input->gate weights per direction
    # whh_ref:  (2, H, 4H)      fused hidden->gate weights per direction
    # b_ref:    (2, 1, 4H)      combined bias (b_ih + b_hh) per direction
    # wemb_ref: (2, H, O_pad)   Linear(2H->O) weight split per dir, lane-padded
    # bemb_ref: (1, O_pad)      Linear bias, lane-padded
    # out_ref:  (T, B, O_pad)   output block (wrapper slices to O)
    # xpf_ref / xpb_ref: (T, B, 4H) VMEM scratch: hoisted input projections
    O_pad = out_ref.shape[-1]

    xb = x_ref[...].astype(jnp.bfloat16)                          # (TB, D)

    # -- Hoisted input projections: one GEMM per direction, bias folded in. --
    xpf = jnp.dot(xb, wih_ref[0].astype(jnp.bfloat16),
                  preferred_element_type=jnp.float32) + b_ref[0]  # (TB, 4H)
    xpb = jnp.dot(xb, wih_ref[1].astype(jnp.bfloat16),
                  preferred_element_type=jnp.float32) + b_ref[1]
    # Re-lay out as (T, B, 4H) once (static slices, prologue only) so the
    # serial loop does tile-aligned leading-dim reads instead of unaligned
    # dynamic sublane slices at t*B.
    for t in range(T):
        xpf_ref[t] = xpf[t * B:(t + 1) * B]
        xpb_ref[t] = xpb[t * B:(t + 1) * B]

    # Weights / bias resident for the whole recurrence.
    whh_f = whh_ref[0].astype(jnp.bfloat16)                       # (H, 4H)
    whh_b = whh_ref[1].astype(jnp.bfloat16)
    wem_f = wemb_ref[0].astype(jnp.bfloat16)                      # (H, O_pad)
    wem_b = wemb_ref[1].astype(jnp.bfloat16)
    bemb = bemb_ref[...]                                          # (1, O_pad)

    # Each out[t] is accumulated into: fwd contribution (+bias) at iter t,
    # bwd contribution at iter T-1-t.  Zero-init so order doesn't matter.
    out_ref[...] = jnp.zeros_like(out_ref)

    def cell(gates, c):
        # One full-width sigmoid + one full-width tanh EUP push over the
        # whole (B, 4H) vreg; gate slices taken after activation.
        sg = jax.nn.sigmoid(gates)
        th = jnp.tanh(gates)
        i = sg[:, 0 * H:1 * H]
        f = sg[:, 1 * H:2 * H]
        g = th[:, 2 * H:3 * H]
        o = sg[:, 3 * H:4 * H]
        c_new = f * c + i * g
        h_new = o * jnp.tanh(c_new)
        return h_new.astype(jnp.bfloat16), c_new                  # h bf16, c f32

    def step(t, carry):
        h_f, c_f, h_b, c_b = carry
        tb = T - 1 - t
        # Two independent recurrences issued back-to-back: their latency
        # chains interleave on a single TensorCore (v5e / v6e).
        gates_f = xpf_ref[t] + jnp.dot(h_f, whh_f,
                                       preferred_element_type=jnp.float32)
        gates_b = xpb_ref[tb] + jnp.dot(h_b, whh_b,
                                        preferred_element_type=jnp.float32)
        h_f, c_f = cell(gates_f, c_f)
        h_b, c_b = cell(gates_b, c_b)
        # Fused Linear epilogue (off the critical chain, lane-dense O_pad).
        out_ref[t] = out_ref[t] + bemb + jnp.dot(
            h_f, wem_f, preferred_element_type=jnp.float32)
        out_ref[tb] = out_ref[tb] + jnp.dot(
            h_b, wem_b, preferred_element_type=jnp.float32)
        return h_f, c_f, h_b, c_b

    h0 = jnp.zeros((B, H), jnp.bfloat16)
    c0 = jnp.zeros((B, H), jnp.float32)
    # Capped unroll: keeps LLO scheduling visibility without blowing the
    # 64-vreg budget once T is realistic.
    jax.lax.fori_loop(0, T, step, (h0, c0, h0, c0), unroll=min(T, 8))


# ------------------------------- Wrapper ------------------------------------
def bidirectional_lstm(x, params):
    """x: (T, B, input_size) f32 -> (T, B, output_size) f32."""
    T, B, D = x.shape
    w_ih, w_hh, b = params["w_ih"], params["w_hh"], params["b"]
    w_emb, b_emb = params["w_emb"], params["b_emb"]
    H = w_hh.shape[1]
    G = 4 * H
    O = w_emb.shape[-1]
    O_pad = ((O + 127) // 128) * 128      # lane-dense epilogue stores
    TB = T * B

    # Zero-pad the Linear weights/bias to a multiple of 128 lanes; padded
    # output columns are exact zeros and sliced off below.
    w_emb_p = jnp.zeros((2, H, O_pad), w_emb.dtype).at[:, :, :O].set(w_emb)
    b_emb_p = jnp.zeros((1, O_pad), b_emb.dtype).at[:, :O].set(b_emb)

    x2d = x.reshape(TB, D)                # contiguous view, free

    kernel = functools.partial(_bilstm_fused_kernel, T=T, B=B, H=H)
    vmem = pl.BlockSpec(memory_space=pltpu.MemorySpace.VMEM)

    out_p = pl.pallas_call(
        kernel,
        out_shape=jax.ShapeDtypeStruct((T, B, O_pad), jnp.float32),
        in_specs=[vmem] * 6,
        out_specs=vmem,
        scratch_shapes=[pltpu.VMEM((T, B, G), jnp.float32),   # xp fwd
                        pltpu.VMEM((T, B, G), jnp.float32)],  # xp bwd
    )(x2d, w_ih, w_hh, b, w_emb_p, b_emb_p)

    return out_p[:, :, :O]


# -------------------------- Params & reference ------------------------------
def init_params(key, input_size, hidden_size, output_size):
    ks = jax.random.split(key, 5)
    s = 1.0 / np.sqrt(hidden_size)
    H = hidden_size
    return dict(
        # per-direction fused gate weights, gate order (i, f, g, o) on last dim
        w_ih=jax.random.uniform(ks[0], (2, input_size, 4 * H),
                                jnp.float32, -s, s),
        w_hh=jax.random.uniform(ks[1], (2, H, 4 * H), jnp.float32, -s, s),
        # combined bias (b_ih + b_hh), fused over gates
        b=jax.random.uniform(ks[2], (2, 1, 4 * H), jnp.float32, -s, s),
        # Linear(2H -> O): w_emb[0] = W[:H, :], w_emb[1] = W[H:, :]
        w_emb=jax.random.uniform(ks[3], (2, H, output_size),
                                 jnp.float32, -s, s),
        b_emb=jax.random.uniform(ks[4], (1, output_size), jnp.float32, -s, s),
    )


def _ref_forward(x, params):
    """Pure-JAX f32 reference with identical semantics (PyTorch gate order)."""
    w_ih, w_hh, b = params["w_ih"], params["w_hh"], params["b"]
    w_emb, b_emb = params["w_emb"], params["b_emb"]
    T, B, _ = x.shape
    H = w_hh.shape[1]

    def run_dir(xd, wihd, whhd, bd):
        def step(carry, xt):
            h, c = carry
            gates = xt @ wihd + h @ whhd + bd        # (B, 4H)
            i = jax.nn.sigmoid(gates[:, 0 * H:1 * H])
            f = jax.nn.sigmoid(gates[:, 1 * H:2 * H])
            g = jnp.tanh(gates[:, 2 * H:3 * H])
            o = jax.nn.sigmoid(gates[:, 3 * H:4 * H])
            c = f * c + i * g
            h = o * jnp.tanh(c)
            return (h, c), h
        init = (jnp.zeros((B, H), jnp.float32), jnp.zeros((B, H), jnp.float32))
        _, hs = jax.lax.scan(step, init, xd)
        return hs

    h_fwd = run_dir(x, w_ih[0], w_hh[0], b[0])
    h_bwd = run_dir(x[::-1], w_ih[1], w_hh[1], b[1])[::-1]
    out = (h_fwd.reshape(T * B, H) @ w_emb[0]
           + h_bwd.reshape(T * B, H) @ w_emb[1] + b_emb)
    return out.reshape(T, B, -1)


if __name__ == "__main__":
    T, B = 8, 2
    input_size, hidden_size, output_size = 16, 32, 24

    key = jax.random.PRNGKey(0)
    k_x, k_p = jax.random.split(key)
    x = jax.random.normal(k_x, (T, B, input_size), jnp.float32)
    params = init_params(k_p, input_size, hidden_size, output_size)

    out = jax.block_until_ready(bidirectional_lstm(x, params))

    ref = _ref_forward(x, params)
    # bf16 matmuls with f32 accumulate -> loosened tolerance vs f32 reference
    np.testing.assert_allclose(np.asarray(out), np.asarray(ref),
                               rtol=2e-2, atol=2e-2)
    print("KERNEL_OK")
</pallas_src>

<mosaic_0001>
module attributes {stable_mosaic.version = 11 : i64} {
  func.func @_bilstm_fused_kernel(%arg0: memref<16x16xf32, #tpu.memory_space<vmem>>, %arg1: memref<2x16x128xf32, #tpu.memory_space<vmem>>, %arg2: memref<2x32x128xf32, #tpu.memory_space<vmem>>, %arg3: memref<2x1x128xf32, #tpu.memory_space<vmem>>, %arg4: memref<2x32x128xf32, #tpu.memory_space<vmem>>, %arg5: memref<1x128xf32, #tpu.memory_space<vmem>>, %arg6: memref<8x2x128xf32, #tpu.memory_space<vmem>>, %arg7: memref<8x2x128xf32, #tpu.memory_space<vmem>>, %arg8: memref<8x2x128xf32, #tpu.memory_space<vmem>>) attributes {dimension_semantics = [], scalar_prefetch = 0 : i64, scratch_operands = 2 : i64, tpu.core_type = #tpu.core_type<tc>} {
    %c0 = arith.constant 0 : index
    %c0_0 = arith.constant 0 : index
    %0 = vector.load %arg0[%c0, %c0_0] : memref<16x16xf32, #tpu.memory_space<vmem>>, vector<16x16xf32>
    %1 = arith.truncf %0 : vector<16x16xf32> to vector<16x16xbf16>
    %c0_1 = arith.constant 0 : index
    %c0_2 = arith.constant 0 : index
    %c0_3 = arith.constant 0 : index
    %2 = vector.load %arg1[%c0_1, %c0_2, %c0_3] : memref<2x16x128xf32, #tpu.memory_space<vmem>>, vector<1x16x128xf32>
    %3 = vector.shape_cast %2 : vector<1x16x128xf32> to vector<16x128xf32>
    %4 = arith.truncf %3 : vector<16x128xf32> to vector<16x128xbf16>
    %cst = arith.constant dense<0.000000e+00> : vector<16x128xf32>
    %5 = tpu.matmul %1, %4, %cst {dimension_numbers = #tpu.dot_dimension_numbers<[1], [0], [0], [1], [0, 0, 1, 1], [], []>} : vector<16x16xbf16>, vector<16x128xbf16>, vector<16x128xf32> -> vector<16x128xf32>
    %c0_4 = arith.constant 0 : index
    %c0_5 = arith.constant 0 : index
    %c0_6 = arith.constant 0 : index
    %6 = vector.load %arg3[%c0_4, %c0_5, %c0_6] : memref<2x1x128xf32, #tpu.memory_space<vmem>>, vector<1x1x128xf32>
    %7 = vector.shape_cast %6 : vector<1x1x128xf32> to vector<1x128xf32>
    %8 = vector.broadcast %7 : vector<1x128xf32> to vector<16x128xf32>
    %9 = arith.addf %5, %8 : vector<16x128xf32>
    %c1 = arith.constant 1 : index
    %c0_7 = arith.constant 0 : index
    %c0_8 = arith.constant 0 : index
    %10 = vector.load %arg1[%c1, %c0_7, %c0_8] : memref<2x16x128xf32, #tpu.memory_space<vmem>>, vector<1x16x128xf32>
    %11 = vector.shape_cast %10 : vector<1x16x128xf32> to vector<16x128xf32>
    %12 = arith.truncf %11 : vector<16x128xf32> to vector<16x128xbf16>
    %cst_9 = arith.constant dense<0.000000e+00> : vector<16x128xf32>
    %13 = tpu.matmul %1, %12, %cst_9 {dimension_numbers = #tpu.dot_dimension_numbers<[1], [0], [0], [1], [0, 0, 1, 1], [], []>} : vector<16x16xbf16>, vector<16x128xbf16>, vector<16x128xf32> -> vector<16x128xf32>
    %c1_10 = arith.constant 1 : index
    %c0_11 = arith.constant 0 : index
    %c0_12 = arith.constant 0 : index
    %14 = vector.load %arg3[%c1_10, %c0_11, %c0_12] : memref<2x1x128xf32, #tpu.memory_space<vmem>>, vector<1x1x128xf32>
    %15 = vector.shape_cast %14 : vector<1x1x128xf32> to vector<1x128xf32>
    %16 = vector.broadcast %15 : vector<1x128xf32> to vector<16x128xf32>
    %17 = arith.addf %13, %16 : vector<16x128xf32>
    %18 = vector.extract_strided_slice %9 {offsets = [0, 0], sizes = [2, 128], strides = [1, 1]} : vector<16x128xf32> to vector<2x128xf32>
    %c0_13 = arith.constant 0 : index
    %c0_14 = arith.constant 0 : index
    %c0_15 = arith.constant 0 : index
    %19 = vector.load %arg7[%c0_13, %c0_14, %c0_15] : memref<8x2x128xf32, #tpu.memory_space<vmem>>, vector<1x2x128xf32>
    %20 = vector.shape_cast %19 : vector<1x2x128xf32> to vector<2x128xf32>
    %21 = vector.shape_cast %18 : vector<2x128xf32> to vector<1x2x128xf32>
    tpu.vector_store %arg7[%c0_13, %c0_14, %c0_15], %21 {strides = array<i32>} : memref<8x2x128xf32, #tpu.memory_space<vmem>>, vector<1x2x128xf32>,
    %22 = vector.extract_strided_slice %17 {offsets = [0, 0], sizes = [2, 128], strides = [1, 1]} : vector<16x128xf32> to vector<2x128xf32>
    %c0_16 = arith.constant 0 : index
    %c0_17 = arith.constant 0 : index
    %c0_18 = arith.constant 0 : index
    %23 = vector.load %arg8[%c0_16, %c0_17, %c0_18] : memref<8x2x128xf32, #tpu.memory_space<vmem>>, vector<1x2x128xf32>
    %24 = vector.shape_cast %23 : vector<1x2x128xf32> to vector<2x128xf32>
    %25 = vector.shape_cast %22 : vector<2x128xf32> to vector<1x2x128xf32>
    tpu.vector_store %arg8[%c0_16, %c0_17, %c0_18], %25 {strides = array<i32>} : memref<8x2x128xf32, #tpu.memory_space<vmem>>, vector<1x2x128xf32>,
    %26 = vector.extract_strided_slice %9 {offsets = [2, 0], sizes = [2, 128], strides = [1, 1]} : vector<16x128xf32> to vector<2x128xf32>
    %c1_19 = arith.constant 1 : index
    %c0_20 = arith.constant 0 : index
    %c0_21 = arith.constant 0 : index
    %27 = vector.load %arg7[%c1_19, %c0_20, %c0_21] : memref<8x2x128xf32, #tpu.memory_space<vmem>>, vector<1x2x128xf32>
    %28 = vector.shape_cast %27 : vector<1x2x128xf32> to vector<2x128xf32>
    %29 = vector.shape_cast %26 : vector<2x128xf32> to vector<1x2x128xf32>
    tpu.vector_store %arg7[%c1_19, %c0_20, %c0_21], %29 {strides = array<i32>} : memref<8x2x128xf32, #tpu.memory_space<vmem>>, vector<1x2x128xf32>,
    %30 = vector.extract_strided_slice %17 {offsets = [2, 0], sizes = [2, 128], strides = [1, 1]} : vector<16x128xf32> to vector<2x128xf32>
    %c1_22 = arith.constant 1 : index
    %c0_23 = arith.constant 0 : index
    %c0_24 = arith.constant 0 : index
    %31 = vector.load %arg8[%c1_22, %c0_23, %c0_24] : memref<8x2x128xf32, #tpu.memory_space<vmem>>, vector<1x2x128xf32>
    %32 = vector.shape_cast %31 : vector<1x2x128xf32> to vector<2x128xf32>
    %33 = vector.shape_cast %30 : vector<2x128xf32> to vector<1x2x128xf32>
    tpu.vector_store %arg8[%c1_22, %c0_23, %c0_24], %33 {strides = array<i32>} : memref<8x2x128xf32, #tpu.memory_space<vmem>>, vector<1x2x128xf32>,
    %34 = vector.extract_strided_slice %9 {offsets = [4, 0], sizes = [2, 128], strides = [1, 1]} : vector<16x128xf32> to vector<2x128xf32>
    %c2 = arith.constant 2 : index
    %c0_25 = arith.constant 0 : index
    %c0_26 = arith.constant 0 : index
    %35 = vector.load %arg7[%c2, %c0_25, %c0_26] : memref<8x2x128xf32, #tpu.memory_space<vmem>>, vector<1x2x128xf32>
    %36 = vector.shape_cast %35 : vector<1x2x128xf32> to vector<2x128xf32>
    %37 = vector.shape_cast %34 : vector<2x128xf32> to vector<1x2x128xf32>
    tpu.vector_store %arg7[%c2, %c0_25, %c0_26], %37 {strides = array<i32>} : memref<8x2x128xf32, #tpu.memory_space<vmem>>, vector<1x2x128xf32>,
    %38 = vector.extract_strided_slice %17 {offsets = [4, 0], sizes = [2, 128], strides = [1, 1]} : vector<16x128xf32> to vector<2x128xf32>
    %c2_27 = arith.constant 2 : index
    %c0_28 = arith.constant 0 : index
    %c0_29 = arith.constant 0 : index
    %39 = vector.load %arg8[%c2_27, %c0_28, %c0_29] : memref<8x2x128xf32, #tpu.memory_space<vmem>>, vector<1x2x128xf32>
    %40 = vector.shape_cast %39 : vector<1x2x128xf32> to vector<2x128xf32>
    %41 = vector.shape_cast %38 : vector<2x128xf32> to vector<1x2x128xf32>
    tpu.vector_store %arg8[%c2_27, %c0_28, %c0_29], %41 {strides = array<i32>} : memref<8x2x128xf32, #tpu.memory_space<vmem>>, vector<1x2x128xf32>,
    %42 = vector.extract_strided_slice %9 {offsets = [6, 0], sizes = [2, 128], strides = [1, 1]} : vector<16x128xf32> to vector<2x128xf32>
    %c3 = arith.constant 3 : index
    %c0_30 = arith.constant 0 : index
    %c0_31 = arith.constant 0 : index
    %43 = vector.load %arg7[%c3, %c0_30, %c0_31] : memref<8x2x128xf32, #tpu.memory_space<vmem>>, vector<1x2x128xf32>
    %44 = vector.shape_cast %43 : vector<1x2x128xf32> to vector<2x128xf32>
    %45 = vector.shape_cast %42 : vector<2x128xf32> to vector<1x2x128xf32>
    tpu.vector_store %arg7[%c3, %c0_30, %c0_31], %45 {strides = array<i32>} : memref<8x2x128xf32, #tpu.memory_space<vmem>>, vector<1x2x128xf32>,
    %46 = vector.extract_strided_slice %17 {offsets = [6, 0], sizes = [2, 128], strides = [1, 1]} : vector<16x128xf32> to vector<2x128xf32>
    %c3_32 = arith.constant 3 : index
    %c0_33 = arith.constant 0 : index
    %c0_34 = arith.constant 0 : index
    %47 = vector.load %arg8[%c3_32, %c0_33, %c0_34] : memref<8x2x128xf32, #tpu.memory_space<vmem>>, vector<1x2x128xf32>
    %48 = vector.shape_cast %47 : vector<1x2x128xf32> to vector<2x128xf32>
    %49 = vector.shape_cast %46 : vector<2x128xf32> to vector<1x2x128xf32>
    tpu.vector_store %arg8[%c3_32, %c0_33, %c0_34], %49 {strides = array<i32>} : memref<8x2x128xf32, #tpu.memory_space<vmem>>, vector<1x2x128xf32>,
    %50 = vector.extract_strided_slice %9 {offsets = [8, 0], sizes = [2, 128], strides = [1, 1]} : vector<16x128xf32> to vector<2x128xf32>
    %c4 = arith.constant 4 : index
    %c0_35 = arith.constant 0 : index
    %c0_36 = arith.constant 0 : index
    %51 = vector.load %arg7[%c4, %c0_35, %c0_36] : memref<8x2x128xf32, #tpu.memory_space<vmem>>, vector<1x2x128xf32>
    %52 = vector.shape_cast %51 : vector<1x2x128xf32> to vector<2x128xf32>
    %53 = vector.shape_cast %50 : vector<2x128xf32> to vector<1x2x128xf32>
    tpu.vector_store %arg7[%c4, %c0_35, %c0_36], %53 {strides = array<i32>} : memref<8x2x128xf32, #tpu.memory_space<vmem>>, vector<1x2x128xf32>,
    %54 = vector.extract_strided_slice %17 {offsets = [8, 0], sizes = [2, 128], strides = [1, 1]} : vector<16x128xf32> to vector<2x128xf32>
    %c4_37 = arith.constant 4 : index
    %c0_38 = arith.constant 0 : index
    %c0_39 = arith.constant 0 : index
    %55 = vector.load %arg8[%c4_37, %c0_38, %c0_39] : memref<8x2x128xf32, #tpu.memory_space<vmem>>, vector<1x2x128xf32>
    %56 = vector.shape_cast %55 : vector<1x2x128xf32> to vector<2x128xf32>
    %57 = vector.shape_cast %54 : vector<2x128xf32> to vector<1x2x128xf32>
    tpu.vector_store %arg8[%c4_37, %c0_38, %c0_39], %57 {strides = array<i32>} : memref<8x2x128xf32, #tpu.memory_space<vmem>>, vector<1x2x128xf32>,
    %58 = vector.extract_strided_slice %9 {offsets = [10, 0], sizes = [2, 128], strides = [1, 1]} : vector<16x128xf32> to vector<2x128xf32>
    %c5 = arith.constant 5 : index
    %c0_40 = arith.constant 0 : index
    %c0_41 = arith.constant 0 : index
    %59 = vector.load %arg7[%c5, %c0_40, %c0_41] : memref<8x2x128xf32, #tpu.memory_space<vmem>>, vector<1x2x128xf32>
    %60 = vector.shape_cast %59 : vector<1x2x128xf32> to vector<2x128xf32>
    %61 = vector.shape_cast %58 : vector<2x128xf32> to vector<1x2x128xf32>
    tpu.vector_store %arg7[%c5, %c0_40, %c0_41], %61 {strides = array<i32>} : memref<8x2x128xf32, #tpu.memory_space<vmem>>, vector<1x2x128xf32>,
    %62 = vector.extract_strided_slice %17 {offsets = [10, 0], sizes = [2, 128], strides = [1, 1]} : vector<16x128xf32> to vector<2x128xf32>
    %c5_42 = arith.constant 5 : index
    %c0_43 = arith.constant 0 : index
    %c0_44 = arith.constant 0 : index
    %63 = vector.load %arg8[%c5_42, %c0_43, %c0_44] : memref<8x2x128xf32, #tpu.memory_space<vmem>>, vector<1x2x128xf32>
    %64 = vector.shape_cast %63 : vector<1x2x128xf32> to vector<2x128xf32>
    %65 = vector.shape_cast %62 : vector<2x128xf32> to vector<1x2x128xf32>
    tpu.vector_store %arg8[%c5_42, %c0_43, %c0_44], %65 {strides = array<i32>} : memref<8x2x128xf32, #tpu.memory_space<vmem>>, vector<1x2x128xf32>,
    %66 = vector.extract_strided_slice %9 {offsets = [12, 0], sizes = [2, 128], strides = [1, 1]} : vector<16x128xf32> to vector<2x128xf32>
    %c6 = arith.constant 6 : index
    %c0_45 = arith.constant 0 : index
    %c0_46 = arith.constant 0 : index
    %67 = vector.load %arg7[%c6, %c0_45, %c0_46] : memref<8x2x128xf32, #tpu.memory_space<vmem>>, vector<1x2x128xf32>
    %68 = vector.shape_cast %67 : vector<1x2x128xf32> to vector<2x128xf32>
    %69 = vector.shape_cast %66 : vector<2x128xf32> to vector<1x2x128xf32>
    tpu.vector_store %arg7[%c6, %c0_45, %c0_46], %69 {strides = array<i32>} : memref<8x2x128xf32, #tpu.memory_space<vmem>>, vector<1x2x128xf32>,
    %70 = vector.extract_strided_slice %17 {offsets = [12, 0], sizes = [2, 128], strides = [1, 1]} : vector<16x128xf32> to vector<2x128xf32>
    %c6_47 = arith.constant 6 : index
    %c0_48 = arith.constant 0 : index
    %c0_49 = arith.constant 0 : index
    %71 = vector.load %arg8[%c6_47, %c0_48, %c0_49] : memref<8x2x128xf32, #tpu.memory_space<vmem>>, vector<1x2x128xf32>
    %72 = vector.shape_cast %71 : vector<1x2x128xf32> to vector<2x128xf32>
    %73 = vector.shape_cast %70 : vector<2x128xf32> to vector<1x2x128xf32>
    tpu.vector_store %arg8[%c6_47, %c0_48, %c0_49], %73 {strides = array<i32>} : memref<8x2x128xf32, #tpu.memory_space<vmem>>, vector<1x2x128xf32>,
    %74 = vector.extract_strided_slice %9 {offsets = [14, 0], sizes = [2, 128], strides = [1, 1]} : vector<16x128xf32> to vector<2x128xf32>
    %c7 = arith.constant 7 : index
    %c0_50 = arith.constant 0 : index
    %c0_51 = arith.constant 0 : index
    %75 = vector.load %arg7[%c7, %c0_50, %c0_51] : memref<8x2x128xf32, #tpu.memory_space<vmem>>, vector<1x2x128xf32>
    %76 = vector.shape_cast %75 : vector<1x2x128xf32> to vector<2x128xf32>
    %77 = vector.shape_cast %74 : vector<2x128xf32> to vector<1x2x128xf32>
    tpu.vector_store %arg7[%c7, %c0_50, %c0_51], %77 {strides = array<i32>} : memref<8x2x128xf32, #tpu.memory_space<vmem>>, vector<1x2x128xf32>,
    %78 = vector.extract_strided_slice %17 {offsets = [14, 0], sizes = [2, 128], strides = [1, 1]} : vector<16x128xf32> to vector<2x128xf32>
    %c7_52 = arith.constant 7 : index
    %c0_53 = arith.constant 0 : index
    %c0_54 = arith.constant 0 : index
    %79 = vector.load %arg8[%c7_52, %c0_53, %c0_54] : memref<8x2x128xf32, #tpu.memory_space<vmem>>, vector<1x2x128xf32>
    %80 = vector.shape_cast %79 : vector<1x2x128xf32> to vector<2x128xf32>
    %81 = vector.shape_cast %78 : vector<2x128xf32> to vector<1x2x128xf32>
    tpu.vector_store %arg8[%c7_52, %c0_53, %c0_54], %81 {strides = array<i32>} : memref<8x2x128xf32, #tpu.memory_space<vmem>>, vector<1x2x128xf32>,
    %c0_55 = arith.constant 0 : index
    %c0_56 = arith.constant 0 : index
    %c0_57 = arith.constant 0 : index
    %82 = vector.load %arg2[%c0_55, %c0_56, %c0_57] : memref<2x32x128xf32, #tpu.memory_space<vmem>>, vector<1x32x128xf32>
    %83 = vector.shape_cast %82 : vector<1x32x128xf32> to vector<32x128xf32>
    %84 = arith.truncf %83 : vector<32x128xf32> to vector<32x128xbf16>
    %c1_58 = arith.constant 1 : index
    %c0_59 = arith.constant 0 : index
    %c0_60 = arith.constant 0 : index
    %85 = vector.load %arg2[%c1_58, %c0_59, %c0_60] : memref<2x32x128xf32, #tpu.memory_space<vmem>>, vector<1x32x128xf32>
    %86 = vector.shape_cast %85 : vector<1x32x128xf32> to vector<32x128xf32>
    %87 = arith.truncf %86 : vector<32x128xf32> to vector<32x128xbf16>
    %c0_61 = arith.constant 0 : index
    %c0_62 = arith.constant 0 : index
    %c0_63 = arith.constant 0 : index
    %88 = vector.load %arg4[%c0_61, %c0_62, %c0_63] : memref<2x32x128xf32, #tpu.memory_space<vmem>>, vector<1x32x128xf32>
    %89 = vector.shape_cast %88 : vector<1x32x128xf32> to vector<32x128xf32>
    %90 = arith.truncf %89 : vector<32x128xf32> to vector<32x128xbf16>
    %c1_64 = arith.constant 1 : index
    %c0_65 = arith.constant 0 : index
    %c0_66 = arith.constant 0 : index
    %91 = vector.load %arg4[%c1_64, %c0_65, %c0_66] : memref<2x32x128xf32, #tpu.memory_space<vmem>>, vector<1x32x128xf32>
    %92 = vector.shape_cast %91 : vector<1x32x128xf32> to vector<32x128xf32>
    %93 = arith.truncf %92 : vector<32x128xf32> to vector<32x128xbf16>
    %c0_67 = arith.constant 0 : index
    %c0_68 = arith.constant 0 : index
    %94 = vector.load %arg5[%c0_67, %c0_68] : memref<1x128xf32, #tpu.memory_space<vmem>>, vector<1x128xf32>
    %cst_69 = arith.constant 0.000000e+00 : f32
    %95 = vector.broadcast %cst_69 : f32 to vector<8x2x128xf32>
    %c0_70 = arith.constant 0 : index
    %c0_71 = arith.constant 0 : index
    %c0_72 = arith.constant 0 : index
    %96 = vector.load %arg6[%c0_70, %c0_71, %c0_72] : memref<8x2x128xf32, #tpu.memory_space<vmem>>, vector<8x2x128xf32>
    tpu.vector_store %arg6[%c0_70, %c0_71, %c0_72], %95 {strides = array<i32>} : memref<8x2x128xf32, #tpu.memory_space<vmem>>, vector<8x2x128xf32>,
    %cst_73 = arith.constant 0.000000e+00 : bf16
    %97 = vector.broadcast %cst_73 : bf16 to vector<2x32xbf16>
    %cst_74 = arith.constant 0.000000e+00 : f32
    %98 = vector.broadcast %cst_74 : f32 to vector<2x32xf32>
    %c0_i32 = arith.constant 0 : i32
    %c7_i32 = arith.constant 7 : i32
    %99 = arith.subi %c7_i32, %c0_i32 : i32
    %100 = arith.index_cast %c0_i32 : i32 to index
    %c0_75 = arith.constant 0 : index
    %c0_76 = arith.constant 0 : index
    %101 = vector.load %arg7[%100, %c0_75, %c0_76] : memref<8x2x128xf32, #tpu.memory_space<vmem>>, vector<1x2x128xf32>
    %102 = vector.shape_cast %101 : vector<1x2x128xf32> to vector<2x128xf32>
    %cst_77 = arith.constant dense<0.000000e+00> : vector<2x128xf32>
    %103 = tpu.matmul %97, %84, %cst_77 {dimension_numbers = #tpu.dot_dimension_numbers<[1], [0], [0], [1], [0, 0, 1, 1], [], []>} : vector<2x32xbf16>, vector<32x128xbf16>, vector<2x128xf32> -> vector<2x128xf32>
    %104 = arith.addf %102, %103 : vector<2x128xf32>
    %105 = arith.index_cast %99 : i32 to index
    %c0_78 = arith.constant 0 : index
    %c0_79 = arith.constant 0 : index
    %106 = vector.load %arg8[%105, %c0_78, %c0_79] : memref<8x2x128xf32, #tpu.memory_space<vmem>>, vector<1x2x128xf32>
    %107 = vector.shape_cast %106 : vector<1x2x128xf32> to vector<2x128xf32>
    %cst_80 = arith.constant dense<0.000000e+00> : vector<2x128xf32>
    %108 = tpu.matmul %97, %87, %cst_80 {dimension_numbers = #tpu.dot_dimension_numbers<[1], [0], [0], [1], [0, 0, 1, 1], [], []>} : vector<2x32xbf16>, vector<32x128xbf16>, vector<2x128xf32> -> vector<2x128xf32>
    %109 = arith.addf %107, %108 : vector<2x128xf32>
    %110 = arith.negf %104 : vector<2x128xf32>
    %111 = math.exp %110 : vector<2x128xf32>
    %cst_81 = arith.constant 1.000000e+00 : f32
    %112 = vector.broadcast %cst_81 : f32 to vector<2x128xf32>
    %113 = arith.addf %112, %111 : vector<2x128xf32>
    %114 = arith.divf %112, %113 : vector<2x128xf32>
    %115 = math.tanh %104 : vector<2x128xf32>
    %116 = vector.extract_strided_slice %114 {offsets = [0, 0], sizes = [2, 32], strides = [1, 1]} : vector<2x128xf32> to vector<2x32xf32>
    %117 = vector.extract_strided_slice %114 {offsets = [0, 32], sizes = [2, 32], strides = [1, 1]} : vector<2x128xf32> to vector<2x32xf32>
    %118 = vector.extract_strided_slice %115 {offsets = [0, 64], sizes = [2, 32], strides = [1, 1]} : vector<2x128xf32> to vector<2x32xf32>
    %119 = vector.extract_strided_slice %114 {offsets = [0, 96], sizes = [2, 32], strides = [1, 1]} : vector<2x128xf32> to vector<2x32xf32>
    %120 = arith.mulf %117, %98 : vector<2x32xf32>
    %121 = arith.mulf %116, %118 : vector<2x32xf32>
    %122 = arith.addf %120, %121 : vector<2x32xf32>
    %123 = math.tanh %122 : vector<2x32xf32>
    %124 = arith.mulf %119, %123 : vector<2x32xf32>
    %125 = arith.truncf %124 : vector<2x32xf32> to vector<2x32xbf16>
    %126 = arith.negf %109 : vector<2x128xf32>
    %127 = math.exp %126 : vector<2x128xf32>
    %cst_82 = arith.constant 1.000000e+00 : f32
    %128 = vector.broadcast %cst_82 : f32 to vector<2x128xf32>
    %129 = arith.addf %128, %127 : vector<2x128xf32>
    %130 = arith.divf %128, %129 : vector<2x128xf32>
    %131 = math.tanh %109 : vector<2x128xf32>
    %132 = vector.extract_strided_slice %130 {offsets = [0, 0], sizes = [2, 32], strides = [1, 1]} : vector<2x128xf32> to vector<2x32xf32>
    %133 = vector.extract_strided_slice %130 {offsets = [0, 32], sizes = [2, 32], strides = [1, 1]} : vector<2x128xf32> to vector<2x32xf32>
    %134 = vector.extract_strided_slice %131 {offsets = [0, 64], sizes = [2, 32], strides = [1, 1]} : vector<2x128xf32> to vector<2x32xf32>
    %135 = vector.extract_strided_slice %130 {offsets = [0, 96], sizes = [2, 32], strides = [1, 1]} : vector<2x128xf32> to vector<2x32xf32>
    %136 = arith.mulf %133, %98 : vector<2x32xf32>
    %137 = arith.mulf %132, %134 : vector<2x32xf32>
    %138 = arith.addf %136, %137 : vector<2x32xf32>
    %139 = math.tanh %138 : vector<2x32xf32>
    %140 = arith.mulf %135, %139 : vector<2x32xf32>
    %141 = arith.truncf %140 : vector<2x32xf32> to vector<2x32xbf16>
    %142 = arith.index_cast %c0_i32 : i32 to index
    %c0_83 = arith.constant 0 : index
    %c0_84 = arith.constant 0 : index
    %143 = vector.load %arg6[%142, %c0_83, %c0_84] : memref<8x2x128xf32, #tpu.memory_space<vmem>>, vector<1x2x128xf32>
    %144 = vector.shape_cast %143 : vector<1x2x128xf32> to vector<2x128xf32>
    %145 = vector.broadcast %94 : vector<1x128xf32> to vector<2x128xf32>
    %146 = arith.addf %144, %145 : vector<2x128xf32>
    %cst_85 = arith.constant dense<0.000000e+00> : vector<2x128xf32>
    %147 = tpu.matmul %125, %90, %cst_85 {dimension_numbers = #tpu.dot_dimension_numbers<[1], [0], [0], [1], [0, 0, 1, 1], [], []>} : vector<2x32xbf16>, vector<32x128xbf16>, vector<2x128xf32> -> vector<2x128xf32>
    %148 = arith.addf %146, %147 : vector<2x128xf32>
    %149 = arith.index_cast %c0_i32 : i32 to index
    %c0_86 = arith.constant 0 : index
    %c0_87 = arith.constant 0 : index
    %150 = vector.load %arg6[%149, %c0_86, %c0_87] : memref<8x2x128xf32, #tpu.memory_space<vmem>>, vector<1x2x128xf32>
    %151 = vector.shape_cast %150 : vector<1x2x128xf32> to vector<2x128xf32>
    %152 = vector.shape_cast %148 : vector<2x128xf32> to vector<1x2x128xf32>
    tpu.vector_store %arg6[%149, %c0_86, %c0_87], %152 {strides = array<i32>} : memref<8x2x128xf32, #tpu.memory_space<vmem>>, vector<1x2x128xf32>,
    %153 = arith.index_cast %99 : i32 to index
    %c0_88 = arith.constant 0 : index
    %c0_89 = arith.constant 0 : index
    %154 = vector.load %arg6[%153, %c0_88, %c0_89] : memref<8x2x128xf32, #tpu.memory_space<vmem>>, vector<1x2x128xf32>
    %155 = vector.shape_cast %154 : vector<1x2x128xf32> to vector<2x128xf32>
    %cst_90 = arith.constant dense<0.000000e+00> : vector<2x128xf32>
    %156 = tpu.matmul %141, %93, %cst_90 {dimension_numbers = #tpu.dot_dimension_numbers<[1], [0], [0], [1], [0, 0, 1, 1], [], []>} : vector<2x32xbf16>, vector<32x128xbf16>, vector<2x128xf32> -> vector<2x128xf32>
    %157 = arith.addf %155, %156 : vector<2x128xf32>
    %158 = arith.index_cast %99 : i32 to index
    %c0_91 = arith.constant 0 : index
    %c0_92 = arith.constant 0 : index
    %159 = vector.load %arg6[%158, %c0_91, %c0_92] : memref<8x2x128xf32, #tpu.memory_space<vmem>>, vector<1x2x128xf32>
    %160 = vector.shape_cast %159 : vector<1x2x128xf32> to vector<2x128xf32>
    %161 = vector.shape_cast %157 : vector<2x128xf32> to vector<1x2x128xf32>
    tpu.vector_store %arg6[%158, %c0_91, %c0_92], %161 {strides = array<i32>} : memref<8x2x128xf32, #tpu.memory_space<vmem>>, vector<1x2x128xf32>,
    %c1_i32 = arith.constant 1 : i32
    %c7_i32_93 = arith.constant 7 : i32
    %162 = arith.subi %c7_i32_93, %c1_i32 : i32
    %163 = arith.index_cast %c1_i32 : i32 to index
    %c0_94 = arith.constant 0 : index
    %c0_95 = arith.constant 0 : index
    %164 = vector.load %arg7[%163, %c0_94, %c0_95] : memref<8x2x128xf32, #tpu.memory_space<vmem>>, vector<1x2x128xf32>
    %165 = vector.shape_cast %164 : vector<1x2x128xf32> to vector<2x128xf32>
    %cst_96 = arith.constant dense<0.000000e+00> : vector<2x128xf32>
    %166 = tpu.matmul %125, %84, %cst_96 {dimension_numbers = #tpu.dot_dimension_numbers<[1], [0], [0], [1], [0, 0, 1, 1], [], []>} : vector<2x32xbf16>, vector<32x128xbf16>, vector<2x128xf32> -> vector<2x128xf32>
    %167 = arith.addf %165, %166 : vector<2x128xf32>
    %168 = arith.index_cast %162 : i32 to index
    %c0_97 = arith.constant 0 : index
    %c0_98 = arith.constant 0 : index
    %169 = vector.load %arg8[%168, %c0_97, %c0_98] : memref<8x2x128xf32, #tpu.memory_space<vmem>>, vector<1x2x128xf32>
    %170 = vector.shape_cast %169 : vector<1x2x128xf32> to vector<2x128xf32>
    %cst_99 = arith.constant dense<0.000000e+00> : vector<2x128xf32>
    %171 = tpu.matmul %141, %87, %cst_99 {dimension_numbers = #tpu.dot_dimension_numbers<[1], [0], [0], [1], [0, 0, 1, 1], [], []>} : vector<2x32xbf16>, vector<32x128xbf16>, vector<2x128xf32> -> vector<2x128xf32>
    %172 = arith.addf %170, %171 : vector<2x128xf32>
    %173 = arith.negf %167 : vector<2x128xf32>
    %174 = math.exp %173 : vector<2x128xf32>
    %cst_100 = arith.constant 1.000000e+00 : f32
    %175 = vector.broadcast %cst_100 : f32 to vector<2x128xf32>
    %176 = arith.addf %175, %174 : vector<2x128xf32>
    %177 = arith.divf %175, %176 : vector<2x128xf32>
    %178 = math.tanh %167 : vector<2x128xf32>
    %179 = vector.extract_strided_slice %177 {offsets = [0, 0], sizes = [2, 32], strides = [1, 1]} : vector<2x128xf32> to vector<2x32xf32>
    %180 = vector.extract_strided_slice %177 {offsets = [0, 32], sizes = [2, 32], strides = [1, 1]} : vector<2x128xf32> to vector<2x32xf32>
    %181 = vector.extract_strided_slice %178 {offsets = [0, 64], sizes = [2, 32], strides = [1, 1]} : vector<2x128xf32> to vector<2x32xf32>
    %182 = vector.extract_strided_slice %177 {offsets = [0, 96], sizes = [2, 32], strides = [1, 1]} : vector<2x128xf32> to vector<2x32xf32>
    %183 = arith.mulf %180, %122 : vector<2x32xf32>
    %184 = arith.mulf %179, %181 : vector<2x32xf32>
    %185 = arith.addf %183, %184 : vector<2x32xf32>
    %186 = math.tanh %185 : vector<2x32xf32>
    %187 = arith.mulf %182, %186 : vector<2x32xf32>
    %188 = arith.truncf %187 : vector<2x32xf32> to vector<2x32xbf16>
    %189 = arith.negf %172 : vector<2x128xf32>
    %190 = math.exp %189 : vector<2x128xf32>
    %cst_101 = arith.constant 1.000000e+00 : f32
    %191 = vector.broadcast %cst_101 : f32 to vector<2x128xf32>
    %192 = arith.addf %191, %190 : vector<2x128xf32>
    %193 = arith.divf %191, %192 : vector<2x128xf32>
    %194 = math.tanh %172 : vector<2x128xf32>
    %195 = vector.extract_strided_slice %193 {offsets = [0, 0], sizes = [2, 32], strides = [1, 1]} : vector<2x128xf32> to vector<2x32xf32>
    %196 = vector.extract_strided_slice %193 {offsets = [0, 32], sizes = [2, 32], strides = [1, 1]} : vector<2x128xf32> to vector<2x32xf32>
    %197 = vector.extract_strided_slice %194 {offsets = [0, 64], sizes = [2, 32], strides = [1, 1]} : vector<2x128xf32> to vector<2x32xf32>
    %198 = vector.extract_strided_slice %193 {offsets = [0, 96], sizes = [2, 32], strides = [1, 1]} : vector<2x128xf32> to vector<2x32xf32>
    %199 = arith.mulf %196, %138 : vector<2x32xf32>
    %200 = arith.mulf %195, %197 : vector<2x32xf32>
    %201 = arith.addf %199, %200 : vector<2x32xf32>
    %202 = math.tanh %201 : vector<2x32xf32>
    %203 = arith.mulf %198, %202 : vector<2x32xf32>
    %204 = arith.truncf %203 : vector<2x32xf32> to vector<2x32xbf16>
    %205 = arith.index_cast %c1_i32 : i32 to index
    %c0_102 = arith.constant 0 : index
    %c0_103 = arith.constant 0 : index
    %206 = vector.load %arg6[%205, %c0_102, %c0_103] : memref<8x2x128xf32, #tpu.memory_space<vmem>>, vector<1x2x128xf32>
    %207 = vector.shape_cast %206 : vector<1x2x128xf32> to vector<2x128xf32>
    %208 = vector.broadcast %94 : vector<1x128xf32> to vector<2x128xf32>
    %209 = arith.addf %207, %208 : vector<2x128xf32>
    %cst_104 = arith.constant dense<0.000000e+00> : vector<2x128xf32>
    %210 = tpu.matmul %188, %90, %cst_104 {dimension_numbers = #tpu.dot_dimension_numbers<[1], [0], [0], [1], [0, 0, 1, 1], [], []>} : vector<2x32xbf16>, vector<32x128xbf16>, vector<2x128xf32> -> vector<2x128xf32>
    %211 = arith.addf %209, %210 : vector<2x128xf32>
    %212 = arith.index_cast %c1_i32 : i32 to index
    %c0_105 = arith.constant 0 : index
    %c0_106 = arith.constant 0 : index
    %213 = vector.load %arg6[%212, %c0_105, %c0_106] : memref<8x2x128xf32, #tpu.memory_space<vmem>>, vector<1x2x128xf32>
    %214 = vector.shape_cast %213 : vector<1x2x128xf32> to vector<2x128xf32>
    %215 = vector.shape_cast %211 : vector<2x128xf32> to vector<1x2x128xf32>
    tpu.vector_store %arg6[%212, %c0_105, %c0_106], %215 {strides = array<i32>} : memref<8x2x128xf32, #tpu.memory_space<vmem>>, vector<1x2x128xf32>,
    %216 = arith.index_cast %162 : i32 to index
    %c0_107 = arith.constant 0 : index
    %c0_108 = arith.constant 0 : index
    %217 = vector.load %arg6[%216, %c0_107, %c0_108] : memref<8x2x128xf32, #tpu.memory_space<vmem>>, vector<1x2x128xf32>
    %218 = vector.shape_cast %217 : vector<1x2x128xf32> to vector<2x128xf32>
    %cst_109 = arith.constant dense<0.000000e+00> : vector<2x128xf32>
    %219 = tpu.matmul %204, %93, %cst_109 {dimension_numbers = #tpu.dot_dimension_numbers<[1], [0], [0], [1], [0, 0, 1, 1], [], []>} : vector<2x32xbf16>, vector<32x128xbf16>, vector<2x128xf32> -> vector<2x128xf32>
    %220 = arith.addf %218, %219 : vector<2x128xf32>
    %221 = arith.index_cast %162 : i32 to index
    %c0_110 = arith.constant 0 : index
    %c0_111 = arith.constant 0 : index
    %222 = vector.load %arg6[%221, %c0_110, %c0_111] : memref<8x2x128xf32, #tpu.memory_space<vmem>>, vector<1x2x128xf32>
    %223 = vector.shape_cast %222 : vector<1x2x128xf32> to vector<2x128xf32>
    %224 = vector.shape_cast %220 : vector<2x128xf32> to vector<1x2x128xf32>
    tpu.vector_store %arg6[%221, %c0_110, %c0_111], %224 {strides = array<i32>} : memref<8x2x128xf32, #tpu.memory_space<vmem>>, vector<1x2x128xf32>,
    %c2_i32 = arith.constant 2 : i32
    %c7_i32_112 = arith.constant 7 : i32
    %225 = arith.subi %c7_i32_112, %c2_i32 : i32
    %226 = arith.index_cast %c2_i32 : i32 to index
    %c0_113 = arith.constant 0 : index
    %c0_114 = arith.constant 0 : index
    %227 = vector.load %arg7[%226, %c0_113, %c0_114] : memref<8x2x128xf32, #tpu.memory_space<vmem>>, vector<1x2x128xf32>
    %228 = vector.shape_cast %227 : vector<1x2x128xf32> to vector<2x128xf32>
    %cst_115 = arith.constant dense<0.000000e+00> : vector<2x128xf32>
    %229 = tpu.matmul %188, %84, %cst_115 {dimension_numbers = #tpu.dot_dimension_numbers<[1], [0], [0], [1], [0, 0, 1, 1], [], []>} : vector<2x32xbf16>, vector<32x128xbf16>, vector<2x128xf32> -> vector<2x128xf32>
    %230 = arith.addf %228, %229 : vector<2x128xf32>
    %231 = arith.index_cast %225 : i32 to index
    %c0_116 = arith.constant 0 : index
    %c0_117 = arith.constant 0 : index
    %232 = vector.load %arg8[%231, %c0_116, %c0_117] : memref<8x2x128xf32, #tpu.memory_space<vmem>>, vector<1x2x128xf32>
    %233 = vector.shape_cast %232 : vector<1x2x128xf32> to vector<2x128xf32>
    %cst_118 = arith.constant dense<0.000000e+00> : vector<2x128xf32>
    %234 = tpu.matmul %204, %87, %cst_118 {dimension_numbers = #tpu.dot_dimension_numbers<[1], [0], [0], [1], [0, 0, 1, 1], [], []>} : vector<2x32xbf16>, vector<32x128xbf16>, vector<2x128xf32> -> vector<2x128xf32>
    %235 = arith.addf %233, %234 : vector<2x128xf32>
    %236 = arith.negf %230 : vector<2x128xf32>
    %237 = math.exp %236 : vector<2x128xf32>
    %cst_119 = arith.constant 1.000000e+00 : f32
    %238 = vector.broadcast %cst_119 : f32 to vector<2x128xf32>
    %239 = arith.addf %238, %237 : vector<2x128xf32>
    %240 = arith.divf %238, %239 : vector<2x128xf32>
    %241 = math.tanh %230 : vector<2x128xf32>
    %242 = vector.extract_strided_slice %240 {offsets = [0, 0], sizes = [2, 32], strides = [1, 1]} : vector<2x128xf32> to vector<2x32xf32>
    %243 = vector.extract_strided_slice %240 {offsets = [0, 32], sizes = [2, 32], strides = [1, 1]} : vector<2x128xf32> to vector<2x32xf32>
    %244 = vector.extract_strided_slice %241 {offsets = [0, 64], sizes = [2, 32], strides = [1, 1]} : vector<2x128xf32> to vector<2x32xf32>
    %245 = vector.extract_strided_slice %240 {offsets = [0, 96], sizes = [2, 32], strides = [1, 1]} : vector<2x128xf32> to vector<2x32xf32>
    %246 = arith.mulf %243, %185 : vector<2x32xf32>
    %247 = arith.mulf %242, %244 : vector<2x32xf32>
    %248 = arith.addf %246, %247 : vector<2x32xf32>
    %249 = math.tanh %248 : vector<2x32xf32>
    %250 = arith.mulf %245, %249 : vector<2x32xf32>
    %251 = arith.truncf %250 : vector<2x32xf32> to vector<2x32xbf16>
    %252 = arith.negf %235 : vector<2x128xf32>
    %253 = math.exp %252 : vector<2x128xf32>
    %cst_120 = arith.constant 1.000000e+00 : f32
    %254 = vector.broadcast %cst_120 : f32 to vector<2x128xf32>
    %255 = arith.addf %254, %253 : vector<2x128xf32>
    %256 = arith.divf %254, %255 : vector<2x128xf32>
    %257 = math.tanh %235 : vector<2x128xf32>
    %258 = vector.extract_strided_slice %256 {offsets = [0, 0], sizes = [2, 32], strides = [1, 1]} : vector<2x128xf32> to vector<2x32xf32>
    %259 = vector.extract_strided_slice %256 {offsets = [0, 32], sizes = [2, 32], strides = [1, 1]} : vector<2x128xf32> to vector<2x32xf32>
    %260 = vector.extract_strided_slice %257 {offsets = [0, 64], sizes = [2, 32], strides = [1, 1]} : vector<2x128xf32> to vector<2x32xf32>
    %261 = vector.extract_strided_slice %256 {offsets = [0, 96], sizes = [2, 32], strides = [1, 1]} : vector<2x128xf32> to vector<2x32xf32>
    %262 = arith.mulf %259, %201 : vector<2x32xf32>
    %263 = arith.mulf %258, %260 : vector<2x32xf32>
    %264 = arith.addf %262, %263 : vector<2x32xf32>
    %265 = math.tanh %264 : vector<2x32xf32>
    %266 = arith.mulf %261, %265 : vector<2x32xf32>
    %267 = arith.truncf %266 : vector<2x32xf32> to vector<2x32xbf16>
    %268 = arith.index_cast %c2_i32 : i32 to index
    %c0_121 = arith.constant 0 : index
    %c0_122 = arith.constant 0 : index
    %269 = vector.load %arg6[%268, %c0_121, %c0_122] : memref<8x2x128xf32, #tpu.memory_space<vmem>>, vector<1x2x128xf32>
    %270 = vector.shape_cast %269 : vector<1x2x128xf32> to vector<2x128xf32>
    %271 = vector.broadcast %94 : vector<1x128xf32> to vector<2x128xf32>
    %272 = arith.addf %270, %271 : vector<2x128xf32>
    %cst_123 = arith.constant dense<0.000000e+00> : vector<2x128xf32>
    %273 = tpu.matmul %251, %90, %cst_123 {dimension_numbers = #tpu.dot_dimension_numbers<[1], [0], [0], [1], [0, 0, 1, 1], [], []>} : vector<2x32xbf16>, vector<32x128xbf16>, vector<2x128xf32> -> vector<2x128xf32>
    %274 = arith.addf %272, %273 : vector<2x128xf32>
    %275 = arith.index_cast %c2_i32 : i32 to index
    %c0_124 = arith.constant 0 : index
    %c0_125 = arith.constant 0 : index
    %276 = vector.load %arg6[%275, %c0_124, %c0_125] : memref<8x2x128xf32, #tpu.memory_space<vmem>>, vector<1x2x128xf32>
    %277 = vector.shape_cast %276 : vector<1x2x128xf32> to vector<2x128xf32>
    %278 = vector.shape_cast %274 : vector<2x128xf32> to vector<1x2x128xf32>
    tpu.vector_store %arg6[%275, %c0_124, %c0_125], %278 {strides = array<i32>} : memref<8x2x128xf32, #tpu.memory_space<vmem>>, vector<1x2x128xf32>,
    %279 = arith.index_cast %225 : i32 to index
    %c0_126 = arith.constant 0 : index
    %c0_127 = arith.constant 0 : index
    %280 = vector.load %arg6[%279, %c0_126, %c0_127] : memref<8x2x128xf32, #tpu.memory_space<vmem>>, vector<1x2x128xf32>
    %281 = vector.shape_cast %280 : vector<1x2x128xf32> to vector<2x128xf32>
    %cst_128 = arith.constant dense<0.000000e+00> : vector<2x128xf32>
    %282 = tpu.matmul %267, %93, %cst_128 {dimension_numbers = #tpu.dot_dimension_numbers<[1], [0], [0], [1], [0, 0, 1, 1], [], []>} : vector<2x32xbf16>, vector<32x128xbf16>, vector<2x128xf32> -> vector<2x128xf32>
    %283 = arith.addf %281, %282 : vector<2x128xf32>
    %284 = arith.index_cast %225 : i32 to index
    %c0_129 = arith.constant 0 : index
    %c0_130 = arith.constant 0 : index
    %285 = vector.load %arg6[%284, %c0_129, %c0_130] : memref<8x2x128xf32, #tpu.memory_space<vmem>>, vector<1x2x128xf32>
    %286 = vector.shape_cast %285 : vector<1x2x128xf32> to vector<2x128xf32>
    %287 = vector.shape_cast %283 : vector<2x128xf32> to vector<1x2x128xf32>
    tpu.vector_store %arg6[%284, %c0_129, %c0_130], %287 {strides = array<i32>} : memref<8x2x128xf32, #tpu.memory_space<vmem>>, vector<1x2x128xf32>,
    %c3_i32 = arith.constant 3 : i32
    %c7_i32_131 = arith.constant 7 : i32
    %288 = arith.subi %c7_i32_131, %c3_i32 : i32
    %289 = arith.index_cast %c3_i32 : i32 to index
    %c0_132 = arith.constant 0 : index
    %c0_133 = arith.constant 0 : index
    %290 = vector.load %arg7[%289, %c0_132, %c0_133] : memref<8x2x128xf32, #tpu.memory_space<vmem>>, vector<1x2x128xf32>
    %291 = vector.shape_cast %290 : vector<1x2x128xf32> to vector<2x128xf32>
    %cst_134 = arith.constant dense<0.000000e+00> : vector<2x128xf32>
    %292 = tpu.matmul %251, %84, %cst_134 {dimension_numbers = #tpu.dot_dimension_numbers<[1], [0], [0], [1], [0, 0, 1, 1], [], []>} : vector<2x32xbf16>, vector<32x128xbf16>, vector<2x128xf32> -> vector<2x128xf32>
    %293 = arith.addf %291, %292 : vector<2x128xf32>
    %294 = arith.index_cast %288 : i32 to index
    %c0_135 = arith.constant 0 : index
    %c0_136 = arith.constant 0 : index
    %295 = vector.load %arg8[%294, %c0_135, %c0_136] : memref<8x2x128xf32, #tpu.memory_space<vmem>>, vector<1x2x128xf32>
    %296 = vector.shape_cast %295 : vector<1x2x128xf32> to vector<2x128xf32>
    %cst_137 = arith.constant dense<0.000000e+00> : vector<2x128xf32>
    %297 = tpu.matmul %267, %87, %cst_137 {dimension_numbers = #tpu.dot_dimension_numbers<[1], [0], [0], [1], [0, 0, 1, 1], [], []>} : vector<2x32xbf16>, vector<32x128xbf16>, vector<2x128xf32> -> vector<2x128xf32>
    %298 = arith.addf %296, %297 : vector<2x128xf32>
    %299 = arith.negf %293 : vector<2x128xf32>
    %300 = math.exp %299 : vector<2x128xf32>
    %cst_138 = arith.constant 1.000000e+00 : f32
    %301 = vector.broadcast %cst_138 : f32 to vector<2x128xf32>
    %302 = arith.addf %301, %300 : vector<2x128xf32>
    %303 = arith.divf %301, %302 : vector<2x128xf32>
    %304 = math.tanh %293 : vector<2x128xf32>
    %305 = vector.extract_strided_slice %303 {offsets = [0, 0], sizes = [2, 32], strides = [1, 1]} : vector<2x128xf32> to vector<2x32xf32>
    %306 = vector.extract_strided_slice %303 {offsets = [0, 32], sizes = [2, 32], strides = [1, 1]} : vector<2x128xf32> to vector<2x32xf32>
    %307 = vector.extract_strided_slice %304 {offsets = [0, 64], sizes = [2, 32], strides = [1, 1]} : vector<2x128xf32> to vector<2x32xf32>
    %308 = vector.extract_strided_slice %303 {offsets = [0, 96], sizes = [2, 32], strides = [1, 1]} : vector<2x128xf32> to vector<2x32xf32>
    %309 = arith.mulf %306, %248 : vector<2x32xf32>
    %310 = arith.mulf %305, %307 : vector<2x32xf32>
    %311 = arith.addf %309, %310 : vector<2x32xf32>
    %312 = math.tanh %311 : vector<2x32xf32>
    %313 = arith.mulf %308, %312 : vector<2x32xf32>
    %314 = arith.truncf %313 : vector<2x32xf32> to vector<2x32xbf16>
    %315 = arith.negf %298 : vector<2x128xf32>
    %316 = math.exp %315 : vector<2x128xf32>
    %cst_139 = arith.constant 1.000000e+00 : f32
    %317 = vector.broadcast %cst_139 : f32 to vector<2x128xf32>
    %318 = arith.addf %317, %316 : vector<2x128xf32>
    %319 = arith.divf %317, %318 : vector<2x128xf32>
    %320 = math.tanh %298 : vector<2x128xf32>
    %321 = vector.extract_strided_slice %319 {offsets = [0, 0], sizes = [2, 32], strides = [1, 1]} : vector<2x128xf32> to vector<2x32xf32>
    %322 = vector.extract_strided_slice %319 {offsets = [0, 32], sizes = [2, 32], strides = [1, 1]} : vector<2x128xf32> to vector<2x32xf32>
    %323 = vector.extract_strided_slice %320 {offsets = [0, 64], sizes = [2, 32], strides = [1, 1]} : vector<2x128xf32> to vector<2x32xf32>
    %324 = vector.extract_strided_slice %319 {offsets = [0, 96], sizes = [2, 32], strides = [1, 1]} : vector<2x128xf32> to vector<2x32xf32>
    %325 = arith.mulf %322, %264 : vector<2x32xf32>
    %326 = arith.mulf %321, %323 : vector<2x32xf32>
    %327 = arith.addf %325, %326 : vector<2x32xf32>
    %328 = math.tanh %327 : vector<2x32xf32>
    %329 = arith.mulf %324, %328 : vector<2x32xf32>
    %330 = arith.truncf %329 : vector<2x32xf32> to vector<2x32xbf16>
    %331 = arith.index_cast %c3_i32 : i32 to index
    %c0_140 = arith.constant 0 : index
    %c0_141 = arith.constant 0 : index
    %332 = vector.load %arg6[%331, %c0_140, %c0_141] : memref<8x2x128xf32, #tpu.memory_space<vmem>>, vector<1x2x128xf32>
    %333 = vector.shape_cast %332 : vector<1x2x128xf32> to vector<2x128xf32>
    %334 = vector.broadcast %94 : vector<1x128xf32> to vector<2x128xf32>
    %335 = arith.addf %333, %334 : vector<2x128xf32>
    %cst_142 = arith.constant dense<0.000000e+00> : vector<2x128xf32>
    %336 = tpu.matmul %314, %90, %cst_142 {dimension_numbers = #tpu.dot_dimension_numbers<[1], [0], [0], [1], [0, 0, 1, 1], [], []>} : vector<2x32xbf16>, vector<32x128xbf16>, vector<2x128xf32> -> vector<2x128xf32>
    %337 = arith.addf %335, %336 : vector<2x128xf32>
    %338 = arith.index_cast %c3_i32 : i32 to index
    %c0_143 = arith.constant 0 : index
    %c0_144 = arith.constant 0 : index
    %339 = vector.load %arg6[%338, %c0_143, %c0_144] : memref<8x2x128xf32, #tpu.memory_space<vmem>>, vector<1x2x128xf32>
    %340 = vector.shape_cast %339 : vector<1x2x128xf32> to vector<2x128xf32>
    %341 = vector.shape_cast %337 : vector<2x128xf32> to vector<1x2x128xf32>
    tpu.vector_store %arg6[%338, %c0_143, %c0_144], %341 {strides = array<i32>} : memref<8x2x128xf32, #tpu.memory_space<vmem>>, vector<1x2x128xf32>,
    %342 = arith.index_cast %288 : i32 to index
    %c0_145 = arith.constant 0 : index
    %c0_146 = arith.constant 0 : index
    %343 = vector.load %arg6[%342, %c0_145, %c0_146] : memref<8x2x128xf32, #tpu.memory_space<vmem>>, vector<1x2x128xf32>
    %344 = vector.shape_cast %343 : vector<1x2x128xf32> to vector<2x128xf32>
    %cst_147 = arith.constant dense<0.000000e+00> : vector<2x128xf32>
    %345 = tpu.matmul %330, %93, %cst_147 {dimension_numbers = #tpu.dot_dimension_numbers<[1], [0], [0], [1], [0, 0, 1, 1], [], []>} : vector<2x32xbf16>, vector<32x128xbf16>, vector<2x128xf32> -> vector<2x128xf32>
    %346 = arith.addf %344, %345 : vector<2x128xf32>
    %347 = arith.index_cast %288 : i32 to index
    %c0_148 = arith.constant 0 : index
    %c0_149 = arith.constant 0 : index
    %348 = vector.load %arg6[%347, %c0_148, %c0_149] : memref<8x2x128xf32, #tpu.memory_space<vmem>>, vector<1x2x128xf32>
    %349 = vector.shape_cast %348 : vector<1x2x128xf32> to vector<2x128xf32>
    %350 = vector.shape_cast %346 : vector<2x128xf32> to vector<1x2x128xf32>
    tpu.vector_store %arg6[%347, %c0_148, %c0_149], %350 {strides = array<i32>} : memref<8x2x128xf32, #tpu.memory_space<vmem>>, vector<1x2x128xf32>,
    %c4_i32 = arith.constant 4 : i32
    %c7_i32_150 = arith.constant 7 : i32
    %351 = arith.subi %c7_i32_150, %c4_i32 : i32
    %352 = arith.index_cast %c4_i32 : i32 to index
    %c0_151 = arith.constant 0 : index
    %c0_152 = arith.constant 0 : index
    %353 = vector.load %arg7[%352, %c0_151, %c0_152] : memref<8x2x128xf32, #tpu.memory_space<vmem>>, vector<1x2x128xf32>
    %354 = vector.shape_cast %353 : vector<1x2x128xf32> to vector<2x128xf32>
    %cst_153 = arith.constant dense<0.000000e+00> : vector<2x128xf32>
    %355 = tpu.matmul %314, %84, %cst_153 {dimension_numbers = #tpu.dot_dimension_numbers<[1], [0], [0], [1], [0, 0, 1, 1], [], []>} : vector<2x32xbf16>, vector<32x128xbf16>, vector<2x128xf32> -> vector<2x128xf32>
    %356 = arith.addf %354, %355 : vector<2x128xf32>
    %357 = arith.index_cast %351 : i32 to index
    %c0_154 = arith.constant 0 : index
    %c0_155 = arith.constant 0 : index
    %358 = vector.load %arg8[%357, %c0_154, %c0_155] : memref<8x2x128xf32, #tpu.memory_space<vmem>>, vector<1x2x128xf32>
    %359 = vector.shape_cast %358 : vector<1x2x128xf32> to vector<2x128xf32>
    %cst_156 = arith.constant dense<0.000000e+00> : vector<2x128xf32>
    %360 = tpu.matmul %330, %87, %cst_156 {dimension_numbers = #tpu.dot_dimension_numbers<[1], [0], [0], [1], [0, 0, 1, 1], [], []>} : vector<2x32xbf16>, vector<32x128xbf16>, vector<2x128xf32> -> vector<2x128xf32>
    %361 = arith.addf %359, %360 : vector<2x128xf32>
    %362 = arith.negf %356 : vector<2x128xf32>
    %363 = math.exp %362 : vector<2x128xf32>
    %cst_157 = arith.constant 1.000000e+00 : f32
    %364 = vector.broadcast %cst_157 : f32 to vector<2x128xf32>
    %365 = arith.addf %364, %363 : vector<2x128xf32>
    %366 = arith.divf %364, %365 : vector<2x128xf32>
    %367 = math.tanh %356 : vector<2x128xf32>
    %368 = vector.extract_strided_slice %366 {offsets = [0, 0], sizes = [2, 32], strides = [1, 1]} : vector<2x128xf32> to vector<2x32xf32>
    %369 = vector.extract_strided_slice %366 {offsets = [0, 32], sizes = [2, 32], strides = [1, 1]} : vector<2x128xf32> to vector<2x32xf32>
    %370 = vector.extract_strided_slice %367 {offsets = [0, 64], sizes = [2, 32], strides = [1, 1]} : vector<2x128xf32> to vector<2x32xf32>
    %371 = vector.extract_strided_slice %366 {offsets = [0, 96], sizes = [2, 32], strides = [1, 1]} : vector<2x128xf32> to vector<2x32xf32>
    %372 = arith.mulf %369, %311 : vector<2x32xf32>
    %373 = arith.mulf %368, %370 : vector<2x32xf32>
    %374 = arith.addf %372, %373 : vector<2x32xf32>
    %375 = math.tanh %374 : vector<2x32xf32>
    %376 = arith.mulf %371, %375 : vector<2x32xf32>
    %377 = arith.truncf %376 : vector<2x32xf32> to vector<2x32xbf16>
    %378 = arith.negf %361 : vector<2x128xf32>
    %379 = math.exp %378 : vector<2x128xf32>
    %cst_158 = arith.constant 1.000000e+00 : f32
    %380 = vector.broadcast %cst_158 : f32 to vector<2x128xf32>
    %381 = arith.addf %380, %379 : vector<2x128xf32>
    %382 = arith.divf %380, %381 : vector<2x128xf32>
    %383 = math.tanh %361 : vector<2x128xf32>
    %384 = vector.extract_strided_slice %382 {offsets = [0, 0], sizes = [2, 32], strides = [1, 1]} : vector<2x128xf32> to vector<2x32xf32>
    %385 = vector.extract_strided_slice %382 {offsets = [0, 32], sizes = [2, 32], strides = [1, 1]} : vector<2x128xf32> to vector<2x32xf32>
    %386 = vector.extract_strided_slice %383 {offsets = [0, 64], sizes = [2, 32], strides = [1, 1]} : vector<2x128xf32> to vector<2x32xf32>
    %387 = vector.extract_strided_slice %382 {offsets = [0, 96], sizes = [2, 32], strides = [1, 1]} : vector<2x128xf32> to vector<2x32xf32>
    %388 = arith.mulf %385, %327 : vector<2x32xf32>
    %389 = arith.mulf %384, %386 : vector<2x32xf32>
    %390 = arith.addf %388, %389 : vector<2x32xf32>
    %391 = math.tanh %390 : vector<2x32xf32>
    %392 = arith.mulf %387, %391 : vector<2x32xf32>
    %393 = arith.truncf %392 : vector<2x32xf32> to vector<2x32xbf16>
    %394 = arith.index_cast %c4_i32 : i32 to index
    %c0_159 = arith.constant 0 : index
    %c0_160 = arith.constant 0 : index
    %395 = vector.load %arg6[%394, %c0_159, %c0_160] : memref<8x2x128xf32, #tpu.memory_space<vmem>>, vector<1x2x128xf32>
    %396 = vector.shape_cast %395 : vector<1x2x128xf32> to vector<2x128xf32>
    %397 = vector.broadcast %94 : vector<1x128xf32> to vector<2x128xf32>
    %398 = arith.addf %396, %397 : vector<2x128xf32>
    %cst_161 = arith.constant dense<0.000000e+00> : vector<2x128xf32>
    %399 = tpu.matmul %377, %90, %cst_161 {dimension_numbers = #tpu.dot_dimension_numbers<[1], [0], [0], [1], [0, 0, 1, 1], [], []>} : vector<2x32xbf16>, vector<32x128xbf16>, vector<2x128xf32> -> vector<2x128xf32>
    %400 = arith.addf %398, %399 : vector<2x128xf32>
    %401 = arith.index_cast %c4_i32 : i32 to index
    %c0_162 = arith.constant 0 : index
    %c0_163 = arith.constant 0 : index
    %402 = vector.load %arg6[%401, %c0_162, %c0_163] : memref<8x2x128xf32, #tpu.memory_space<vmem>>, vector<1x2x128xf32>
    %403 = vector.shape_cast %402 : vector<1x2x128xf32> to vector<2x128xf32>
    %404 = vector.shape_cast %400 : vector<2x128xf32> to vector<1x2x128xf32>
    tpu.vector_store %arg6[%401, %c0_162, %c0_163], %404 {strides = array<i32>} : memref<8x2x128xf32, #tpu.memory_space<vmem>>, vector<1x2x128xf32>,
    %405 = arith.index_cast %351 : i32 to index
    %c0_164 = arith.constant 0 : index
    %c0_165 = arith.constant 0 : index
    %406 = vector.load %arg6[%405, %c0_164, %c0_165] : memref<8x2x128xf32, #tpu.memory_space<vmem>>, vector<1x2x128xf32>
    %407 = vector.shape_cast %406 : vector<1x2x128xf32> to vector<2x128xf32>
    %cst_166 = arith.constant dense<0.000000e+00> : vector<2x128xf32>
    %408 = tpu.matmul %393, %93, %cst_166 {dimension_numbers = #tpu.dot_dimension_numbers<[1], [0], [0], [1], [0, 0, 1, 1], [], []>} : vector<2x32xbf16>, vector<32x128xbf16>, vector<2x128xf32> -> vector<2x128xf32>
    %409 = arith.addf %407, %408 : vector<2x128xf32>
    %410 = arith.index_cast %351 : i32 to index
    %c0_167 = arith.constant 0 : index
    %c0_168 = arith.constant 0 : index
    %411 = vector.load %arg6[%410, %c0_167, %c0_168] : memref<8x2x128xf32, #tpu.memory_space<vmem>>, vector<1x2x128xf32>
    %412 = vector.shape_cast %411 : vector<1x2x128xf32> to vector<2x128xf32>
    %413 = vector.shape_cast %409 : vector<2x128xf32> to vector<1x2x128xf32>
    tpu.vector_store %arg6[%410, %c0_167, %c0_168], %413 {strides = array<i32>} : memref<8x2x128xf32, #tpu.memory_space<vmem>>, vector<1x2x128xf32>,
    %c5_i32 = arith.constant 5 : i32
    %c7_i32_169 = arith.constant 7 : i32
    %414 = arith.subi %c7_i32_169, %c5_i32 : i32
    %415 = arith.index_cast %c5_i32 : i32 to index
    %c0_170 = arith.constant 0 : index
    %c0_171 = arith.constant 0 : index
    %416 = vector.load %arg7[%415, %c0_170, %c0_171] : memref<8x2x128xf32, #tpu.memory_space<vmem>>, vector<1x2x128xf32>
    %417 = vector.shape_cast %416 : vector<1x2x128xf32> to vector<2x128xf32>
    %cst_172 = arith.constant dense<0.000000e+00> : vector<2x128xf32>
    %418 = tpu.matmul %377, %84, %cst_172 {dimension_numbers = #tpu.dot_dimension_numbers<[1], [0], [0], [1], [0, 0, 1, 1], [], []>} : vector<2x32xbf16>, vector<32x128xbf16>, vector<2x128xf32> -> vector<2x128xf32>
    %419 = arith.addf %417, %418 : vector<2x128xf32>
    %420 = arith.index_cast %414 : i32 to index
    %c0_173 = arith.constant 0 : index
    %c0_174 = arith.constant 0 : index
    %421 = vector.load %arg8[%420, %c0_173, %c0_174] : memref<8x2x128xf32, #tpu.memory_space<vmem>>, vector<1x2x128xf32>
    %422 = vector.shape_cast %421 : vector<1x2x128xf32> to vector<2x128xf32>
    %cst_175 = arith.constant dense<0.000000e+00> : vector<2x128xf32>
    %423 = tpu.matmul %393, %87, %cst_175 {dimension_numbers = #tpu.dot_dimension_numbers<[1], [0], [0], [1], [0, 0, 1, 1], [], []>} : vector<2x32xbf16>, vector<32x128xbf16>, vector<2x128xf32> -> vector<2x128xf32>
    %424 = arith.addf %422, %423 : vector<2x128xf32>
    %425 = arith.negf %419 : vector<2x128xf32>
    %426 = math.exp %425 : vector<2x128xf32>
    %cst_176 = arith.constant 1.000000e+00 : f32
    %427 = vector.broadcast %cst_176 : f32 to vector<2x128xf32>
    %428 = arith.addf %427, %426 : vector<2x128xf32>
    %429 = arith.divf %427, %428 : vector<2x128xf32>
    %430 = math.tanh %419 : vector<2x128xf32>
    %431 = vector.extract_strided_slice %429 {offsets = [0, 0], sizes = [2, 32], strides = [1, 1]} : vector<2x128xf32> to vector<2x32xf32>
    %432 = vector.extract_strided_slice %429 {offsets = [0, 32], sizes = [2, 32], strides = [1, 1]} : vector<2x128xf32> to vector<2x32xf32>
    %433 = vector.extract_strided_slice %430 {offsets = [0, 64], sizes = [2, 32], strides = [1, 1]} : vector<2x128xf32> to vector<2x32xf32>
    %434 = vector.extract_strided_slice %429 {offsets = [0, 96], sizes = [2, 32], strides = [1, 1]} : vector<2x128xf32> to vector<2x32xf32>
    %435 = arith.mulf %432, %374 : vector<2x32xf32>
    %436 = arith.mulf %431, %433 : vector<2x32xf32>
    %437 = arith.addf %435, %436 : vector<2x32xf32>
    %438 = math.tanh %437 : vector<2x32xf32>
    %439 = arith.mulf %434, %438 : vector<2x32xf32>
    %440 = arith.truncf %439 : vector<2x32xf32> to vector<2x32xbf16>
    %441 = arith.negf %424 : vector<2x128xf32>
    %442 = math.exp %441 : vector<2x128xf32>
    %cst_177 = arith.constant 1.000000e+00 : f32
    %443 = vector.broadcast %cst_177 : f32 to vector<2x128xf32>
    %444 = arith.addf %443, %442 : vector<2x128xf32>
    %445 = arith.divf %443, %444 : vector<2x128xf32>
    %446 = math.tanh %424 : vector<2x128xf32>
    %447 = vector.extract_strided_slice %445 {offsets = [0, 0], sizes = [2, 32], strides = [1, 1]} : vector<2x128xf32> to vector<2x32xf32>
    %448 = vector.extract_strided_slice %445 {offsets = [0, 32], sizes = [2, 32], strides = [1, 1]} : vector<2x128xf32> to vector<2x32xf32>
    %449 = vector.extract_strided_slice %446 {offsets = [0, 64], sizes = [2, 32], strides = [1, 1]} : vector<2x128xf32> to vector<2x32xf32>
    %450 = vector.extract_strided_slice %445 {offsets = [0, 96], sizes = [2, 32], strides = [1, 1]} : vector<2x128xf32> to vector<2x32xf32>
    %451 = arith.mulf %448, %390 : vector<2x32xf32>
    %452 = arith.mulf %447, %449 : vector<2x32xf32>
    %453 = arith.addf %451, %452 : vector<2x32xf32>
    %454 = math.tanh %453 : vector<2x32xf32>
    %455 = arith.mulf %450, %454 : vector<2x32xf32>
    %456 = arith.truncf %455 : vector<2x32xf32> to vector<2x32xbf16>
    %457 = arith.index_cast %c5_i32 : i32 to index
    %c0_178 = arith.constant 0 : index
    %c0_179 = arith.constant 0 : index
    %458 = vector.load %arg6[%457, %c0_178, %c0_179] : memref<8x2x128xf32, #tpu.memory_space<vmem>>, vector<1x2x128xf32>
    %459 = vector.shape_cast %458 : vector<1x2x128xf32> to vector<2x128xf32>
    %460 = vector.broadcast %94 : vector<1x128xf32> to vector<2x128xf32>
    %461 = arith.addf %459, %460 : vector<2x128xf32>
    %cst_180 = arith.constant dense<0.000000e+00> : vector<2x128xf32>
    %462 = tpu.matmul %440, %90, %cst_180 {dimension_numbers = #tpu.dot_dimension_numbers<[1], [0], [0], [1], [0, 0, 1, 1], [], []>} : vector<2x32xbf16>, vector<32x128xbf16>, vector<2x128xf32> -> vector<2x128xf32>
    %463 = arith.addf %461, %462 : vector<2x128xf32>
    %464 = arith.index_cast %c5_i32 : i32 to index
    %c0_181 = arith.constant 0 : index
    %c0_182 = arith.constant 0 : index
    %465 = vector.load %arg6[%464, %c0_181, %c0_182] : memref<8x2x128xf32, #tpu.memory_space<vmem>>, vector<1x2x128xf32>
    %466 = vector.shape_cast %465 : vector<1x2x128xf32> to vector<2x128xf32>
    %467 = vector.shape_cast %463 : vector<2x128xf32> to vector<1x2x128xf32>
    tpu.vector_store %arg6[%464, %c0_181, %c0_182], %467 {strides = array<i32>} : memref<8x2x128xf32, #tpu.memory_space<vmem>>, vector<1x2x128xf32>,
    %468 = arith.index_cast %414 : i32 to index
    %c0_183 = arith.constant 0 : index
    %c0_184 = arith.constant 0 : index
    %469 = vector.load %arg6[%468, %c0_183, %c0_184] : memref<8x2x128xf32, #tpu.memory_space<vmem>>, vector<1x2x128xf32>
    %470 = vector.shape_cast %469 : vector<1x2x128xf32> to vector<2x128xf32>
    %cst_185 = arith.constant dense<0.000000e+00> : vector<2x128xf32>
    %471 = tpu.matmul %456, %93, %cst_185 {dimension_numbers = #tpu.dot_dimension_numbers<[1], [0], [0], [1], [0, 0, 1, 1], [], []>} : vector<2x32xbf16>, vector<32x128xbf16>, vector<2x128xf32> -> vector<2x128xf32>
    %472 = arith.addf %470, %471 : vector<2x128xf32>
    %473 = arith.index_cast %414 : i32 to index
    %c0_186 = arith.constant 0 : index
    %c0_187 = arith.constant 0 : index
    %474 = vector.load %arg6[%473, %c0_186, %c0_187] : memref<8x2x128xf32, #tpu.memory_space<vmem>>, vector<1x2x128xf32>
    %475 = vector.shape_cast %474 : vector<1x2x128xf32> to vector<2x128xf32>
    %476 = vector.shape_cast %472 : vector<2x128xf32> to vector<1x2x128xf32>
    tpu.vector_store %arg6[%473, %c0_186, %c0_187], %476 {strides = array<i32>} : memref<8x2x128xf32, #tpu.memory_space<vmem>>, vector<1x2x128xf32>,
    %c6_i32 = arith.constant 6 : i32
    %c7_i32_188 = arith.constant 7 : i32
    %477 = arith.subi %c7_i32_188, %c6_i32 : i32
    %478 = arith.index_cast %c6_i32 : i32 to index
    %c0_189 = arith.constant 0 : index
    %c0_190 = arith.constant 0 : index
    %479 = vector.load %arg7[%478, %c0_189, %c0_190] : memref<8x2x128xf32, #tpu.memory_space<vmem>>, vector<1x2x128xf32>
    %480 = vector.shape_cast %479 : vector<1x2x128xf32> to vector<2x128xf32>
    %cst_191 = arith.constant dense<0.000000e+00> : vector<2x128xf32>
    %481 = tpu.matmul %440, %84, %cst_191 {dimension_numbers = #tpu.dot_dimension_numbers<[1], [0], [0], [1], [0, 0, 1, 1], [], []>} : vector<2x32xbf16>, vector<32x128xbf16>, vector<2x128xf32> -> vector<2x128xf32>
    %482 = arith.addf %480, %481 : vector<2x128xf32>
    %483 = arith.index_cast %477 : i32 to index
    %c0_192 = arith.constant 0 : index
    %c0_193 = arith.constant 0 : index
    %484 = vector.load %arg8[%483, %c0_192, %c0_193] : memref<8x2x128xf32, #tpu.memory_space<vmem>>, vector<1x2x128xf32>
    %485 = vector.shape_cast %484 : vector<1x2x128xf32> to vector<2x128xf32>
    %cst_194 = arith.constant dense<0.000000e+00> : vector<2x128xf32>
    %486 = tpu.matmul %456, %87, %cst_194 {dimension_numbers = #tpu.dot_dimension_numbers<[1], [0], [0], [1], [0, 0, 1, 1], [], []>} : vector<2x32xbf16>, vector<32x128xbf16>, vector<2x128xf32> -> vector<2x128xf32>
    %487 = arith.addf %485, %486 : vector<2x128xf32>
    %488 = arith.negf %482 : vector<2x128xf32>
    %489 = math.exp %488 : vector<2x128xf32>
    %cst_195 = arith.constant 1.000000e+00 : f32
    %490 = vector.broadcast %cst_195 : f32 to vector<2x128xf32>
    %491 = arith.addf %490, %489 : vector<2x128xf32>
    %492 = arith.divf %490, %491 : vector<2x128xf32>
    %493 = math.tanh %482 : vector<2x128xf32>
    %494 = vector.extract_strided_slice %492 {offsets = [0, 0], sizes = [2, 32], strides = [1, 1]} : vector<2x128xf32> to vector<2x32xf32>
    %495 = vector.extract_strided_slice %492 {offsets = [0, 32], sizes = [2, 32], strides = [1, 1]} : vector<2x128xf32> to vector<2x32xf32>
    %496 = vector.extract_strided_slice %493 {offsets = [0, 64], sizes = [2, 32], strides = [1, 1]} : vector<2x128xf32> to vector<2x32xf32>
    %497 = vector.extract_strided_slice %492 {offsets = [0, 96], sizes = [2, 32], strides = [1, 1]} : vector<2x128xf32> to vector<2x32xf32>
    %498 = arith.mulf %495, %437 : vector<2x32xf32>
    %499 = arith.mulf %494, %496 : vector<2x32xf32>
    %500 = arith.addf %498, %499 : vector<2x32xf32>
    %501 = math.tanh %500 : vector<2x32xf32>
    %502 = arith.mulf %497, %501 : vector<2x32xf32>
    %503 = arith.truncf %502 : vector<2x32xf32> to vector<2x32xbf16>
    %504 = arith.negf %487 : vector<2x128xf32>
    %505 = math.exp %504 : vector<2x128xf32>
    %cst_196 = arith.constant 1.000000e+00 : f32
    %506 = vector.broadcast %cst_196 : f32 to vector<2x128xf32>
    %507 = arith.addf %506, %505 : vector<2x128xf32>
    %508 = arith.divf %506, %507 : vector<2x128xf32>
    %509 = math.tanh %487 : vector<2x128xf32>
    %510 = vector.extract_strided_slice %508 {offsets = [0, 0], sizes = [2, 32], strides = [1, 1]} : vector<2x128xf32> to vector<2x32xf32>
    %511 = vector.extract_strided_slice %508 {offsets = [0, 32], sizes = [2, 32], strides = [1, 1]} : vector<2x128xf32> to vector<2x32xf32>
    %512 = vector.extract_strided_slice %509 {offsets = [0, 64], sizes = [2, 32], strides = [1, 1]} : vector<2x128xf32> to vector<2x32xf32>
    %513 = vector.extract_strided_slice %508 {offsets = [0, 96], sizes = [2, 32], strides = [1, 1]} : vector<2x128xf32> to vector<2x32xf32>
    %514 = arith.mulf %511, %453 : vector<2x32xf32>
    %515 = arith.mulf %510, %512 : vector<2x32xf32>
    %516 = arith.addf %514, %515 : vector<2x32xf32>
    %517 = math.tanh %516 : vector<2x32xf32>
    %518 = arith.mulf %513, %517 : vector<2x32xf32>
    %519 = arith.truncf %518 : vector<2x32xf32> to vector<2x32xbf16>
    %520 = arith.index_cast %c6_i32 : i32 to index
    %c0_197 = arith.constant 0 : index
    %c0_198 = arith.constant 0 : index
    %521 = vector.load %arg6[%520, %c0_197, %c0_198] : memref<8x2x128xf32, #tpu.memory_space<vmem>>, vector<1x2x128xf32>
    %522 = vector.shape_cast %521 : vector<1x2x128xf32> to vector<2x128xf32>
    %523 = vector.broadcast %94 : vector<1x128xf32> to vector<2x128xf32>
    %524 = arith.addf %522, %523 : vector<2x128xf32>
    %cst_199 = arith.constant dense<0.000000e+00> : vector<2x128xf32>
    %525 = tpu.matmul %503, %90, %cst_199 {dimension_numbers = #tpu.dot_dimension_numbers<[1], [0], [0], [1], [0, 0, 1, 1], [], []>} : vector<2x32xbf16>, vector<32x128xbf16>, vector<2x128xf32> -> vector<2x128xf32>
    %526 = arith.addf %524, %525 : vector<2x128xf32>
    %527 = arith.index_cast %c6_i32 : i32 to index
    %c0_200 = arith.constant 0 : index
    %c0_201 = arith.constant 0 : index
    %528 = vector.load %arg6[%527, %c0_200, %c0_201] : memref<8x2x128xf32, #tpu.memory_space<vmem>>, vector<1x2x128xf32>
    %529 = vector.shape_cast %528 : vector<1x2x128xf32> to vector<2x128xf32>
    %530 = vector.shape_cast %526 : vector<2x128xf32> to vector<1x2x128xf32>
    tpu.vector_store %arg6[%527, %c0_200, %c0_201], %530 {strides = array<i32>} : memref<8x2x128xf32, #tpu.memory_space<vmem>>, vector<1x2x128xf32>,
    %531 = arith.index_cast %477 : i32 to index
    %c0_202 = arith.constant 0 : index
    %c0_203 = arith.constant 0 : index
    %532 = vector.load %arg6[%531, %c0_202, %c0_203] : memref<8x2x128xf32, #tpu.memory_space<vmem>>, vector<1x2x128xf32>
    %533 = vector.shape_cast %532 : vector<1x2x128xf32> to vector<2x128xf32>
    %cst_204 = arith.constant dense<0.000000e+00> : vector<2x128xf32>
    %534 = tpu.matmul %519, %93, %cst_204 {dimension_numbers = #tpu.dot_dimension_numbers<[1], [0], [0], [1], [0, 0, 1, 1], [], []>} : vector<2x32xbf16>, vector<32x128xbf16>, vector<2x128xf32> -> vector<2x128xf32>
    %535 = arith.addf %533, %534 : vector<2x128xf32>
    %536 = arith.index_cast %477 : i32 to index
    %c0_205 = arith.constant 0 : index
    %c0_206 = arith.constant 0 : index
    %537 = vector.load %arg6[%536, %c0_205, %c0_206] : memref<8x2x128xf32, #tpu.memory_space<vmem>>, vector<1x2x128xf32>
    %538 = vector.shape_cast %537 : vector<1x2x128xf32> to vector<2x128xf32>
    %539 = vector.shape_cast %535 : vector<2x128xf32> to vector<1x2x128xf32>
    tpu.vector_store %arg6[%536, %c0_205, %c0_206], %539 {strides = array<i32>} : memref<8x2x128xf32, #tpu.memory_space<vmem>>, vector<1x2x128xf32>,
    %c7_i32_207 = arith.constant 7 : i32
    %c7_i32_208 = arith.constant 7 : i32
    %540 = arith.subi %c7_i32_208, %c7_i32_207 : i32
    %541 = arith.index_cast %c7_i32_207 : i32 to index
    %c0_209 = arith.constant 0 : index
    %c0_210 = arith.constant 0 : index
    %542 = vector.load %arg7[%541, %c0_209, %c0_210] : memref<8x2x128xf32, #tpu.memory_space<vmem>>, vector<1x2x128xf32>
    %543 = vector.shape_cast %542 : vector<1x2x128xf32> to vector<2x128xf32>
    %cst_211 = arith.constant dense<0.000000e+00> : vector<2x128xf32>
    %544 = tpu.matmul %503, %84, %cst_211 {dimension_numbers = #tpu.dot_dimension_numbers<[1], [0], [0], [1], [0, 0, 1, 1], [], []>} : vector<2x32xbf16>, vector<32x128xbf16>, vector<2x128xf32> -> vector<2x128xf32>
    %545 = arith.addf %543, %544 : vector<2x128xf32>
    %546 = arith.index_cast %540 : i32 to index
    %c0_212 = arith.constant 0 : index
    %c0_213 = arith.constant 0 : index
    %547 = vector.load %arg8[%546, %c0_212, %c0_213] : memref<8x2x128xf32, #tpu.memory_space<vmem>>, vector<1x2x128xf32>
    %548 = vector.shape_cast %547 : vector<1x2x128xf32> to vector<2x128xf32>
    %cst_214 = arith.constant dense<0.000000e+00> : vector<2x128xf32>
    %549 = tpu.matmul %519, %87, %cst_214 {dimension_numbers = #tpu.dot_dimension_numbers<[1], [0], [0], [1], [0, 0, 1, 1], [], []>} : vector<2x32xbf16>, vector<32x128xbf16>, vector<2x128xf32> -> vector<2x128xf32>
    %550 = arith.addf %548, %549 : vector<2x128xf32>
    %551 = arith.negf %545 : vector<2x128xf32>
    %552 = math.exp %551 : vector<2x128xf32>
    %cst_215 = arith.constant 1.000000e+00 : f32
    %553 = vector.broadcast %cst_215 : f32 to vector<2x128xf32>
    %554 = arith.addf %553, %552 : vector<2x128xf32>
    %555 = arith.divf %553, %554 : vector<2x128xf32>
    %556 = math.tanh %545 : vector<2x128xf32>
    %557 = vector.extract_strided_slice %555 {offsets = [0, 0], sizes = [2, 32], strides = [1, 1]} : vector<2x128xf32> to vector<2x32xf32>
    %558 = vector.extract_strided_slice %555 {offsets = [0, 32], sizes = [2, 32], strides = [1, 1]} : vector<2x128xf32> to vector<2x32xf32>
    %559 = vector.extract_strided_slice %556 {offsets = [0, 64], sizes = [2, 32], strides = [1, 1]} : vector<2x128xf32> to vector<2x32xf32>
    %560 = vector.extract_strided_slice %555 {offsets = [0, 96], sizes = [2, 32], strides = [1, 1]} : vector<2x128xf32> to vector<2x32xf32>
    %561 = arith.mulf %558, %500 : vector<2x32xf32>
    %562 = arith.mulf %557, %559 : vector<2x32xf32>
    %563 = arith.addf %561, %562 : vector<2x32xf32>
    %564 = math.tanh %563 : vector<2x32xf32>
    %565 = arith.mulf %560, %564 : vector<2x32xf32>
    %566 = arith.truncf %565 : vector<2x32xf32> to vector<2x32xbf16>
    %567 = arith.negf %550 : vector<2x128xf32>
    %568 = math.exp %567 : vector<2x128xf32>
    %cst_216 = arith.constant 1.000000e+00 : f32
    %569 = vector.broadcast %cst_216 : f32 to vector<2x128xf32>
    %570 = arith.addf %569, %568 : vector<2x128xf32>
    %571 = arith.divf %569, %570 : vector<2x128xf32>
    %572 = math.tanh %550 : vector<2x128xf32>
    %573 = vector.extract_strided_slice %571 {offsets = [0, 0], sizes = [2, 32], strides = [1, 1]} : vector<2x128xf32> to vector<2x32xf32>
    %574 = vector.extract_strided_slice %571 {offsets = [0, 32], sizes = [2, 32], strides = [1, 1]} : vector<2x128xf32> to vector<2x32xf32>
    %575 = vector.extract_strided_slice %572 {offsets = [0, 64], sizes = [2, 32], strides = [1, 1]} : vector<2x128xf32> to vector<2x32xf32>
    %576 = vector.extract_strided_slice %571 {offsets = [0, 96], sizes = [2, 32], strides = [1, 1]} : vector<2x128xf32> to vector<2x32xf32>
    %577 = arith.mulf %574, %516 : vector<2x32xf32>
    %578 = arith.mulf %573, %575 : vector<2x32xf32>
    %579 = arith.addf %577, %578 : vector<2x32xf32>
    %580 = math.tanh %579 : vector<2x32xf32>
    %581 = arith.mulf %576, %580 : vector<2x32xf32>
    %582 = arith.truncf %581 : vector<2x32xf32> to vector<2x32xbf16>
    %583 = arith.index_cast %c7_i32_207 : i32 to index
    %c0_217 = arith.constant 0 : index
    %c0_218 = arith.constant 0 : index
    %584 = vector.load %arg6[%583, %c0_217, %c0_218] : memref<8x2x128xf32, #tpu.memory_space<vmem>>, vector<1x2x128xf32>
    %585 = vector.shape_cast %584 : vector<1x2x128xf32> to vector<2x128xf32>
    %586 = vector.broadcast %94 : vector<1x128xf32> to vector<2x128xf32>
    %587 = arith.addf %585, %586 : vector<2x128xf32>
    %cst_219 = arith.constant dense<0.000000e+00> : vector<2x128xf32>
    %588 = tpu.matmul %566, %90, %cst_219 {dimension_numbers = #tpu.dot_dimension_numbers<[1], [0], [0], [1], [0, 0, 1, 1], [], []>} : vector<2x32xbf16>, vector<32x128xbf16>, vector<2x128xf32> -> vector<2x128xf32>
    %589 = arith.addf %587, %588 : vector<2x128xf32>
    %590 = arith.index_cast %c7_i32_207 : i32 to index
    %c0_220 = arith.constant 0 : index
    %c0_221 = arith.constant 0 : index
    %591 = vector.load %arg6[%590, %c0_220, %c0_221] : memref<8x2x128xf32, #tpu.memory_space<vmem>>, vector<1x2x128xf32>
    %592 = vector.shape_cast %591 : vector<1x2x128xf32> to vector<2x128xf32>
    %593 = vector.shape_cast %589 : vector<2x128xf32> to vector<1x2x128xf32>
    tpu.vector_store %arg6[%590, %c0_220, %c0_221], %593 {strides = array<i32>} : memref<8x2x128xf32, #tpu.memory_space<vmem>>, vector<1x2x128xf32>,
    %594 = arith.index_cast %540 : i32 to index
    %c0_222 = arith.constant 0 : index
    %c0_223 = arith.constant 0 : index
    %595 = vector.load %arg6[%594, %c0_222, %c0_223] : memref<8x2x128xf32, #tpu.memory_space<vmem>>, vector<1x2x128xf32>
    %596 = vector.shape_cast %595 : vector<1x2x128xf32> to vector<2x128xf32>
    %cst_224 = arith.constant dense<0.000000e+00> : vector<2x128xf32>
    %597 = tpu.matmul %582, %93, %cst_224 {dimension_numbers = #tpu.dot_dimension_numbers<[1], [0], [0], [1], [0, 0, 1, 1], [], []>} : vector<2x32xbf16>, vector<32x128xbf16>, vector<2x128xf32> -> vector<2x128xf32>
    %598 = arith.addf %596, %597 : vector<2x128xf32>
    %599 = arith.index_cast %540 : i32 to index
    %c0_225 = arith.constant 0 : index
    %c0_226 = arith.constant 0 : index
    %600 = vector.load %arg6[%599, %c0_225, %c0_226] : memref<8x2x128xf32, #tpu.memory_space<vmem>>, vector<1x2x128xf32>
    %601 = vector.shape_cast %600 : vector<1x2x128xf32> to vector<2x128xf32>
    %602 = vector.shape_cast %598 : vector<2x128xf32> to vector<1x2x128xf32>
    tpu.vector_store %arg6[%599, %c0_225, %c0_226], %602 {strides = array<i32>} : memref<8x2x128xf32, #tpu.memory_space<vmem>>, vector<1x2x128xf32>,
    %c8_i32 = arith.constant 8 : i32
    return
  }
}

</mosaic_0001>

<llo_original>
// kernel: tpu_custom_call.1
$region0: #{tpu_custom_call.1}
  #allocation0 [shape = 'u32[]', space=smem, size = 0x4, offset = 0x4, fixed_abs, tag = 'smem constant byte address 0x4 - core index']
  #allocation1 [shape = 'u32[72,128]{1,0:T(1,128)}', space=vmem, size = 0x9000, scoped, tag = 'internal scratch']
  #allocation2 [shape = 'f32[8,2,128]{2,1,0:T(2,128)}', space=vmem, size = 0x2000, scoped, tag = 'scratch operand']
  #allocation3 [shape = 'f32[8,2,128]{2,1,0:T(2,128)}', space=vmem, size = 0x2000, scoped, tag = 'scratch operand']
  %s0 = inlined_call_operand.hbm [shape: f32[16,16], index: 0, kind: input, shape index: {}]
  %s1 = inlined_call_operand.hbm [shape: f32[2,16,128], index: 1, kind: input, shape index: {}]
  %s2 = inlined_call_operand.hbm [shape: f32[2,32,128], index: 2, kind: input, shape index: {}]
  %s3 = inlined_call_operand.vmem [shape: f32[2,1,128], index: 3, kind: input, shape index: {}]
  %s4 = inlined_call_operand.hbm [shape: f32[2,32,128], index: 4, kind: input, shape index: {}]
  %s5 = inlined_call_operand.vmem [shape: f32[1,128], index: 5, kind: input, shape index: {}]
  %s6 = inlined_call_operand.hbm [shape: f32[8,2,128], index: 6, kind: output, shape index: {}]
  %s7 = sld [smem:[#allocation0]]
  $region50: #{tpu_custom_call.1} parent=0
    _
  %s9 = ssub.s32 1, %s7
  %s10 = scalar_select 0, %s9, %s7
  $region1: #{tpu_custom_call.1} parent=0
    #allocation4 [shape = 'u8[8192]{0}', space=vmem, size = 0x2000, scoped, tag = 'input window, operand 0, single buffered']
    #allocation5 [shape = 's32[1]{0}', space=sflag, size = 0x4, scoped, tag = 'scoped memory for tpu_custom_call.1']
    #allocation6 [shape = 's32[1]{0}', space=sflag, size = 0x4, scoped, tag = 'scoped memory for tpu_custom_call.1']
    #allocation7 [shape = 'u8[16384]{0}', space=vmem, size = 0x4000, scoped, tag = 'input window, operand 1, single buffered']
    #allocation8 [shape = 's32[1]{0}', space=sflag, size = 0x4, scoped, tag = 'scoped memory for tpu_custom_call.1']
    #allocation9 [shape = 'u8[32768]{0}', space=vmem, size = 0x8000, scoped, tag = 'input window, operand 2, single buffered']
    #allocation10 [shape = 'u8[32768]{0}', space=vmem, size = 0x8000, scoped, tag = 'input window, operand 4, single buffered']
    #allocation11 [shape = 's32[1]{0}', space=sflag, size = 0x4, scoped, tag = 'scoped memory for tpu_custom_call.1']
    #allocation12 [shape = 'u8[8192]{0}', space=vmem, size = 0x2000, scoped, tag = 'output window, operand 0, single buffered']
    %11 = vsyncpa [#allocation5], 0
    %12 = vsyncpa [#allocation8], 0
    %13 = vsyncpa [#allocation11], 0
    %14 = vsyncpa [#allocation6], 0
    // Predicated region
    $region2: #{tpu_custom_call.1} parent=1 // pred_check
      _
    $region3: #{tpu_custom_call.1} parent=1 // pred_check_branch
      %16 = sbr.rel (0) target = $region5
    $region4: #{tpu_custom_call.1} parent=1 // pred_region
      %18 = vsyncadd [#allocation5], 0
      %s19 = sshll.u32 %s0, 4
      %s20 = int_to_ptr.hbm [resolvable:$true] %s19
      %s21 = sshll.u32 [#allocation4], 4
      %s22 = int_to_ptr.vmem [resolvable:$true] %s21
      %27 = dma.hbm_to_vmem [thread:$0]  %s20, 256, %s22, [#allocation5], 128, 128, 8
    $region5: #{tpu_custom_call.1} parent=1 // pred_fallthru
      _
    // Predicated region
    $region6: #{tpu_custom_call.1} parent=1 // pred_check
      _
    $region7: #{tpu_custom_call.1} parent=1 // pred_check_branch
      %29 = sbr.rel (0) target = $region9
    $region8: #{tpu_custom_call.1} parent=1 // pred_region
      %31 = vsyncadd [#allocation8], 0
      %s32 = sshll.u32 %s1, 4
      %s33 = int_to_ptr.hbm [resolvable:$true] %s32
      %s34 = sshll.u32 [#allocation7], 4
      %s35 = int_to_ptr.vmem [resolvable:$true] %s34
      %40 = dma.hbm_to_vmem [thread:$0]  %s33, 512, %s35, [#allocation8], 128, 128, 8
    $region9: #{tpu_custom_call.1} parent=1 // pred_fallthru
      _
    // Predicated region
    $region10: #{tpu_custom_call.1} parent=1 // pred_check
      _
    $region11: #{tpu_custom_call.1} parent=1 // pred_check_branch
      %42 = sbr.rel (0) target = $region13
    $region12: #{tpu_custom_call.1} parent=1 // pred_region
      %44 = vsyncadd [#allocation8], 0
      %s45 = sshll.u32 %s2, 4
      %s46 = int_to_ptr.hbm [resolvable:$true] %s45
      %s47 = sshll.u32 [#allocation9], 4
      %s48 = int_to_ptr.vmem [resolvable:$true] %s47
      %53 = dma.hbm_to_vmem [thread:$0]  %s46, 1024, %s48, [#allocation8], 128, 128, 8
    $region13: #{tpu_custom_call.1} parent=1 // pred_fallthru
      _
    // Predicated region
    $region14: #{tpu_custom_call.1} parent=1 // pred_check
      _
    $region15: #{tpu_custom_call.1} parent=1 // pred_check_branch
      %55 = sbr.rel (0) target = $region17
    $region16: #{tpu_custom_call.1} parent=1 // pred_region
      _
    $region17: #{tpu_custom_call.1} parent=1 // pred_fallthru
      _
    // Predicated region
    $region18: #{tpu_custom_call.1} parent=1 // pred_check
      _
    $region19: #{tpu_custom_call.1} parent=1 // pred_check_branch
      %57 = sbr.rel (0) target = $region21
    $region20: #{tpu_custom_call.1} parent=1 // pred_region
      %59 = vsyncadd [#allocation11], 0
      %s60 = sshll.u32 %s4, 4
      %s61 = int_to_ptr.hbm [resolvable:$true] %s60
      %s62 = sshll.u32 [#allocation10], 4
      %s63 = int_to_ptr.vmem [resolvable:$true] %s62
      %68 = dma.hbm_to_vmem [thread:$0]  %s61, 1024, %s63, [#allocation11], 128, 128, 8
    $region21: #{tpu_custom_call.1} parent=1 // pred_fallthru
      _
    // Predicated region
    $region22: #{tpu_custom_call.1} parent=1 // pred_check
      _
    $region23: #{tpu_custom_call.1} parent=1 // pred_check_branch
      %70 = sbr.rel (0) target = $region25
    $region24: #{tpu_custom_call.1} parent=1 // pred_region
      _
    $region25: #{tpu_custom_call.1} parent=1 // pred_fallthru
      _
    // Predicated region
    $region26: #{tpu_custom_call.1} parent=1 // pred_check
      _
    $region27: #{tpu_custom_call.1} parent=1 // pred_check_branch
      %72 = sbr.rel (0) target = $region29
    $region28: #{tpu_custom_call.1} parent=1 // pred_region
      %74 = dma.done [#allocation5], 256
    $region29: #{tpu_custom_call.1} parent=1 // pred_fallthru
      _
    // Predicated region
    $region30: #{tpu_custom_call.1} parent=1 // pred_check
      _
    $region31: #{tpu_custom_call.1} parent=1 // pred_check_branch
      %76 = sbr.rel (0) target = $region33
    $region32: #{tpu_custom_call.1} parent=1 // pred_region
      %78 = dma.done [#allocation8], 512
    $region33: #{tpu_custom_call.1} parent=1 // pred_fallthru
      _
    // Predicated region
    $region34: #{tpu_custom_call.1} parent=1 // pred_check
      _
    $region35: #{tpu_custom_call.1} parent=1 // pred_check_branch
      %80 = sbr.rel (0) target = $region37
    $region36: #{tpu_custom_call.1} parent=1 // pred_region
      %82 = dma.done [#allocation8], 1024
    $region37: #{tpu_custom_call.1} parent=1 // pred_fallthru
      _
    // Predicated region
    $region38: #{tpu_custom_call.1} parent=1 // pred_check
      _
    $region39: #{tpu_custom_call.1} parent=1 // pred_check_branch
      %84 = sbr.rel (0) target = $region41
    $region40: #{tpu_custom_call.1} parent=1 // pred_region
      %86 = dma.done [#allocation11], 1024
    $region41: #{tpu_custom_call.1} parent=1 // pred_fallthru
      _
    %v88 = vld [vmem:[#allocation4] sm:$0xff]
    %v89 = vld [vmem:[#allocation4 + $0x8] sm:$0xff]
    %v90 = vpack.c.bf16 %v89, %v88
    %v91 = vld [vmem:[#allocation7] sm:$0xff]
    %v92 = vld [vmem:[#allocation7 + $0x8] sm:$0xff]
    %v93 = vpack.c.bf16 %v92, %v91
    %v94 = vld [vmem:[%s3] sm:$0x1]
    %v96 = vperm.slane %v94, 0
    %vm98 = vcmask 130048
    %v100 = vsel %vm98, %v90, 0
    %102 = vmatpush.bf16.msra.mxu0 0
    %103 = vmatpush.bf16.msra.mxu0 0
    %104 = vmatpush.bf16.msra.mxu0 0
    %105 = vmatpush.bf16.msra.mxu0 0
    %106 = vmatpush.bf16.msra.mxu0 0
    %107 = vmatpush.bf16.msra.mxu0 0
    %108 = vmatpush.bf16.msra.mxu0 0
    %109 = vmatpush.bf16.msra.mxu0 %v93
    %110 = vmatmul.bf16.gmra.mxu0 %v100
    %v111 = vpop.f32.mrf.mxu0
    %v112 = vadd.f32 %v96, %v111
    %v113 = vpop.f32.mrf.mxu0
    %v114 = vadd.f32 %v96, %v113
    %115 = vdwg.mxu0
    %s116 = scalar_lea.vmem [#allocation7], 16
    %v117 = vld [vmem:[%s116] sm:$0xff]
    %v118 = vld [vmem:[%s116 + $0x8] sm:$0xff]
    %v119 = vpack.c.bf16 %v118, %v117
    %s120 = scalar_lea.vmem %s3, 1
    %v121 = vld [vmem:[%s120] sm:$0x1]
    %v123 = vperm.slane %v121, 0
    %125 = vmatpush.bf16.msra.mxu0 0
    %126 = vmatpush.bf16.msra.mxu0 0
    %127 = vmatpush.bf16.msra.mxu0 0
    %128 = vmatpush.bf16.msra.mxu0 0
    %129 = vmatpush.bf16.msra.mxu0 0
    %130 = vmatpush.bf16.msra.mxu0 0
    %131 = vmatpush.bf16.msra.mxu0 0
    %132 = vmatpush.bf16.msra.mxu0 %v119
    %133 = vmatmul.bf16.gmra.mxu0 %v100
    %v134 = vpop.f32.mrf.mxu0
    %v135 = vadd.f32 %v123, %v134
    %v136 = vpop.f32.mrf.mxu0
    %v137 = vadd.f32 %v123, %v136
    %138 = vdwg.mxu0
    %139 = vst [vmem:[#allocation2] sm:$0x3] %v112
    %140 = vst [vmem:[#allocation3] sm:$0x3] %v135
    %s141 = scalar_lea.vmem [#allocation2], 2
    %142 = vst [vmem:[%s141 - $0x2] sm:$0xc] %v112
    %s143 = scalar_lea.vmem [#allocation3], 2
    %144 = vst [vmem:[%s143 - $0x2] sm:$0xc] %v135
    %s145 = scalar_lea.vmem [#allocation2], 4
    %146 = vst [vmem:[%s145 - $0x4] sm:$0x30] %v112
    %s147 = scalar_lea.vmem [#allocation3], 4
    %148 = vst [vmem:[%s147 - $0x4] sm:$0x30] %v135
    %s149 = scalar_lea.vmem [#allocation2], 6
    %150 = vst [vmem:[%s149 - $0x6] sm:$0xc0] %v112
    %s151 = scalar_lea.vmem [#allocation3], 6
    %152 = vst [vmem:[%s151 - $0x6] sm:$0xc0] %v135
    %s153 = scalar_lea.vmem [#allocation2], 8
    %154 = vst [vmem:[%s153] sm:$0x3] %v114
    %s155 = scalar_lea.vmem [#allocation3], 8
    %156 = vst [vmem:[%s155] sm:$0x3] %v137
    %s157 = scalar_lea.vmem [#allocation2], 10
    %158 = vst [vmem:[%s157 - $0x2] sm:$0xc] %v114
    %s159 = scalar_lea.vmem [#allocation3], 10
    %160 = vst [vmem:[%s159 - $0x2] sm:$0xc] %v137
    %s161 = scalar_lea.vmem [#allocation2], 12
    %162 = vst [vmem:[%s161 - $0x4] sm:$0x30] %v114
    %s163 = scalar_lea.vmem [#allocation3], 12
    %164 = vst [vmem:[%s163 - $0x4] sm:$0x30] %v137
    %s165 = scalar_lea.vmem [#allocation2], 14
    %166 = vst [vmem:[%s165 - $0x6] sm:$0xc0] %v114
    %s167 = scalar_lea.vmem [#allocation3], 14
    %168 = vst [vmem:[%s167 - $0x6] sm:$0xc0] %v137
    %v169 = vld [vmem:[#allocation9] sm:$0xff]
    %v170 = vld [vmem:[#allocation9 + $0x8] sm:$0xff]
    %v171 = vld [vmem:[#allocation9 + $0x10] sm:$0xff]
    %v172 = vld [vmem:[#allocation9 + $0x18] sm:$0xff]
    %v173 = vpack.c.bf16 %v170, %v169
    %v174 = vpack.c.bf16 %v172, %v171
    %s175 = scalar_lea.vmem [#allocation9], 32
    %v176 = vld [vmem:[%s175] sm:$0xff]
    %v177 = vld [vmem:[%s175 + $0x8] sm:$0xff]
    %v178 = vld [vmem:[%s175 + $0x10] sm:$0xff]
    %v179 = vld [vmem:[%s175 + $0x18] sm:$0xff]
    %v180 = vpack.c.bf16 %v177, %v176
    %v181 = vpack.c.bf16 %v179, %v178
    %v182 = vld [vmem:[#allocation10] sm:$0xff]
    %v183 = vld [vmem:[#allocation10 + $0x8] sm:$0xff]
    %v184 = vld [vmem:[#allocation10 + $0x10] sm:$0xff]
    %v185 = vld [vmem:[#allocation10 + $0x18] sm:$0xff]
    %v186 = vpack.c.bf16 %v183, %v182
    %v187 = vpack.c.bf16 %v185, %v184
    %s188 = scalar_lea.vmem [#allocation10], 32
    %v189 = vld [vmem:[%s188] sm:$0xff]
    %v190 = vld [vmem:[%s188 + $0x8] sm:$0xff]
    %v191 = vld [vmem:[%s188 + $0x10] sm:$0xff]
    %v192 = vld [vmem:[%s188 + $0x18] sm:$0xff]
    %v193 = vpack.c.bf16 %v190, %v189
    %v194 = vpack.c.bf16 %v192, %v191
    %v195 = vld [vmem:[%s5] sm:$0x1]
    %196 = vst [vmem:[#allocation12] sm:$0x3] 0.0
    %197 = vst [vmem:[#allocation12 + $0x2] sm:$0x3] 0.0
    %198 = vst [vmem:[#allocation12 + $0x4] sm:$0x3] 0.0
    %199 = vst [vmem:[#allocation12 + $0x6] sm:$0x3] 0.0
    %200 = vst [vmem:[#allocation12 + $0x8] sm:$0x3] 0.0
    %201 = vst [vmem:[#allocation12 + $0xa] sm:$0x3] 0.0
    %202 = vst [vmem:[#allocation12 + $0xc] sm:$0x3] 0.0
    %203 = vst [vmem:[#allocation12 + $0xe] sm:$0x3] 0.0
    %v204 = vld [vmem:[#allocation2] sm:$0x3]
    %vm205 = vcmask 261120
    %v207 = vsel %vm205, 0, 0
    %209 = vmatpush.bf16.msra.mxu0 0
    %210 = vmatpush.bf16.msra.mxu0 0
    %211 = vmatpush.bf16.msra.mxu0 0
    %212 = vmatpush.bf16.msra.mxu0 0
    %213 = vmatpush.bf16.msra.mxu0 0
    %214 = vmatpush.bf16.msra.mxu0 0
    %215 = vmatpush.bf16.msra.mxu0 %v174
    %216 = vmatpush.bf16.msra.mxu0 %v173
    %217 = vmatmul.bf16.gmra.mxu0 %v207
    %v218 = vpop.f32.mrf.mxu0
    %v219 = vadd.f32 0.0, %v218
    %v220 = vpop.f32.mrf.mxu0
    %221 = vdwg.mxu0
    %v222 = vadd.f32 %v204, %v219
    %v223 = vld [vmem:[%s167] sm:$0x3]
    %224 = vmatpush.bf16.msra.mxu0 0
    %225 = vmatpush.bf16.msra.mxu0 0
    %226 = vmatpush.bf16.msra.mxu0 0
    %227 = vmatpush.bf16.msra.mxu0 0
    %228 = vmatpush.bf16.msra.mxu0 0
    %229 = vmatpush.bf16.msra.mxu0 0
    %230 = vmatpush.bf16.msra.mxu0 %v181
    %231 = vmatpush.bf16.msra.mxu0 %v180
    %232 = vmatmul.bf16.gmra.mxu0 %v207
    %v233 = vpop.f32.mrf.mxu0
    %v234 = vadd.f32 0.0, %v233
    %v235 = vpop.f32.mrf.mxu0
    %236 = vdwg.mxu0
    %v237 = vadd.f32 %v223, %v234
    %v238 = vxor.u32 %v222, 2147483648
    %v239 = vmul.f32 %v238, 1.442695
    %v240 = vpow.pop %v239
    %v241 = vadd.f32 %v240, 1.0
    %v242 = vrcp.pop %v241
    %v243 = vmul.f32 %v241, %v242
    %v244 = vsub.f32 1.0, %v243
    %v245 = vmul.f32 %v242, %v244
    %v246 = vadd.f32 %v242, %v245
    %vm247 = vweird.f32 %v241
    %vm248 = vweird.f32 %v242
    %vm249 = vmor %vm247, %vm248
    %v250 = vsel %vm249, %v242, %v246
    %v251 = vand.u32 2147483647, %v241
    %vm252 = vcmp.eq.f32.partialorder %v251, 8.507059e+37
    %v253 = vand.u32 %v241, 2147483648
    %v254 = vor.u32 1.1754944e-38, %v253
    %v255 = vsel %vm252, %v254, %v250
    %v256 = vmul.f32 1.0, %v255
    %v257 = vtanh.pop %v222
    %v258 = vmul.f32 %v256, 0.0
    %260 = vrot.lane.b32.xlu0 %v257, 64
    %v261 = vpop.permute.xlu0 %260
    %v263 = vmul.f32 %v256, %v261
    %265 = vrot.lane.b32.xlu0 %v263, 32
    %v266 = vpop.permute.xlu0 %265
    %v268 = vadd.f32 %v258, %v266
    %v269 = vtanh.pop %v268
    %271 = vrot.lane.b32.xlu0 %v269, 64
    %v272 = vpop.permute.xlu0 %271
    %v274 = vmul.f32 %v256, %v272
    %v275 = vpack.c.bf16 %v274, %v274
    %v276 = vxor.u32 %v237, 2147483648
    %v277 = vmul.f32 %v276, 1.442695
    %v278 = vpow.pop %v277
    %v279 = vadd.f32 %v278, 1.0
    %v280 = vrcp.pop %v279
    %v281 = vmul.f32 %v279, %v280
    %v282 = vsub.f32 1.0, %v281
    %v283 = vmul.f32 %v280, %v282
    %v284 = vadd.f32 %v280, %v283
    %vm285 = vweird.f32 %v279
    %vm286 = vweird.f32 %v280
    %vm287 = vmor %vm285, %vm286
    %v288 = vsel %vm287, %v280, %v284
    %v289 = vand.u32 2147483647, %v279
    %vm290 = vcmp.eq.f32.partialorder %v289, 8.507059e+37
    %v291 = vand.u32 %v279, 2147483648
    %v292 = vor.u32 1.1754944e-38, %v291
    %v293 = vsel %vm290, %v292, %v288
    %v294 = vmul.f32 1.0, %v293
    %v295 = vtanh.pop %v237
    %v296 = vmul.f32 %v294, 0.0
    %298 = vrot.lane.b32.xlu0 %v295, 64
    %v299 = vpop.permute.xlu0 %298
    %v301 = vmul.f32 %v294, %v299
    %303 = vrot.lane.b32.xlu0 %v301, 32
    %v304 = vpop.permute.xlu0 %303
    %v306 = vadd.f32 %v296, %v304
    %v307 = vtanh.pop %v306
    %309 = vrot.lane.b32.xlu0 %v307, 64
    %v310 = vpop.permute.xlu0 %309
    %v312 = vmul.f32 %v294, %v310
    %v313 = vpack.c.bf16 %v312, %v312
    %v314 = vld [vmem:[#allocation12] sm:$0x3]
    %v316 = vperm.slane %v195, 0
    %v318 = vadd.f32 %v314, %v316
    %320 = vrot.lane.b32.xlu0 %v275, 32
    %v321 = vpop.permute.xlu0 %320
    %v323 = vsel %vm205, %v321, 0
    %325 = vmatpush.bf16.msra.mxu0 0
    %326 = vmatpush.bf16.msra.mxu0 0
    %327 = vmatpush.bf16.msra.mxu0 0
    %328 = vmatpush.bf16.msra.mxu0 0
    %329 = vmatpush.bf16.msra.mxu0 0
    %330 = vmatpush.bf16.msra.mxu0 0
    %331 = vmatpush.bf16.msra.mxu0 %v187
    %332 = vmatpush.bf16.msra.mxu0 %v186
    %333 = vmatmul.bf16.gmra.mxu0 %v323
    %v334 = vpop.f32.mrf.mxu0
    %v335 = vadd.f32 0.0, %v334
    %v336 = vpop.f32.mrf.mxu0
    %337 = vdwg.mxu0
    %v338 = vadd.f32 %v318, %v335
    %339 = vst [vmem:[#allocation12] sm:$0x3] %v338
    %s340 = scalar_lea.vmem [#allocation12], 14
    %v341 = vld [vmem:[%s340] sm:$0x3]
    %343 = vrot.lane.b32.xlu0 %v313, 32
    %v344 = vpop.permute.xlu0 %343
    %v346 = vsel %vm205, %v344, 0
    %348 = vmatpush.bf16.msra.mxu0 0
    %349 = vmatpush.bf16.msra.mxu0 0
    %350 = vmatpush.bf16.msra.mxu0 0
    %351 = vmatpush.bf16.msra.mxu0 0
    %352 = vmatpush.bf16.msra.mxu0 0
    %353 = vmatpush.bf16.msra.mxu0 0
    %354 = vmatpush.bf16.msra.mxu0 %v194
    %355 = vmatpush.bf16.msra.mxu0 %v193
    %356 = vmatmul.bf16.gmra.mxu0 %v346
    %v357 = vpop.f32.mrf.mxu0
    %v358 = vadd.f32 0.0, %v357
    %v359 = vpop.f32.mrf.mxu0
    %360 = vdwg.mxu0
    %v361 = vadd.f32 %v341, %v358
    %362 = vst [vmem:[%s340] sm:$0x3] %v361
    %v363 = vld [vmem:[%s141] sm:$0x3]
    %364 = vmatpush.bf16.msra.mxu0 0
    %365 = vmatpush.bf16.msra.mxu0 0
    %366 = vmatpush.bf16.msra.mxu0 0
    %367 = vmatpush.bf16.msra.mxu0 0
    %368 = vmatpush.bf16.msra.mxu0 0
    %369 = vmatpush.bf16.msra.mxu0 0
    %370 = vmatpush.bf16.msra.mxu0 %v174
    %371 = vmatpush.bf16.msra.mxu0 %v173
    %372 = vmatmul.bf16.gmra.mxu0 %v323
    %v373 = vpop.f32.mrf.mxu0
    %v374 = vadd.f32 0.0, %v373
    %v375 = vpop.f32.mrf.mxu0
    %376 = vdwg.mxu0
    %v377 = vadd.f32 %v363, %v374
    %v378 = vld [vmem:[%s163] sm:$0x3]
    %379 = vmatpush.bf16.msra.mxu0 0
    %380 = vmatpush.bf16.msra.mxu0 0
    %381 = vmatpush.bf16.msra.mxu0 0
    %382 = vmatpush.bf16.msra.mxu0 0
    %383 = vmatpush.bf16.msra.mxu0 0
    %384 = vmatpush.bf16.msra.mxu0 0
    %385 = vmatpush.bf16.msra.mxu0 %v181
    %386 = vmatpush.bf16.msra.mxu0 %v180
    %387 = vmatmul.bf16.gmra.mxu0 %v346
    %v388 = vpop.f32.mrf.mxu0
    %v389 = vadd.f32 0.0, %v388
    %v390 = vpop.f32.mrf.mxu0
    %391 = vdwg.mxu0
    %v392 = vadd.f32 %v378, %v389
    %v393 = vxor.u32 %v377, 2147483648
    %v394 = vmul.f32 %v393, 1.442695
    %v395 = vpow.pop %v394
    %v396 = vadd.f32 %v395, 1.0
    %v397 = vrcp.pop %v396
    %v398 = vmul.f32 %v396, %v397
    %v399 = vsub.f32 1.0, %v398
    %v400 = vmul.f32 %v397, %v399
    %v401 = vadd.f32 %v397, %v400
    %vm402 = vweird.f32 %v396
    %vm403 = vweird.f32 %v397
    %vm404 = vmor %vm402, %vm403
    %v405 = vsel %vm404, %v397, %v401
    %v406 = vand.u32 2147483647, %v396
    %vm407 = vcmp.eq.f32.partialorder %v406, 8.507059e+37
    %v408 = vand.u32 %v396, 2147483648
    %v409 = vor.u32 1.1754944e-38, %v408
    %v410 = vsel %vm407, %v409, %v405
    %v411 = vmul.f32 1.0, %v410
    %v412 = vtanh.pop %v377
    %v413 = vmul.f32 %v411, %v268
    %415 = vrot.lane.b32.xlu0 %v412, 64
    %v416 = vpop.permute.xlu0 %415
    %v418 = vmul.f32 %v411, %v416
    %420 = vrot.lane.b32.xlu0 %v418, 32
    %v421 = vpop.permute.xlu0 %420
    %v423 = vadd.f32 %v413, %v421
    %v424 = vtanh.pop %v423
    %426 = vrot.lane.b32.xlu0 %v424, 64
    %v427 = vpop.permute.xlu0 %426
    %v429 = vmul.f32 %v411, %v427
    %v430 = vpack.c.bf16 %v429, %v429
    %v431 = vxor.u32 %v392, 2147483648
    %v432 = vmul.f32 %v431, 1.442695
    %v433 = vpow.pop %v432
    %v434 = vadd.f32 %v433, 1.0
    %v435 = vrcp.pop %v434
    %v436 = vmul.f32 %v434, %v435
    %v437 = vsub.f32 1.0, %v436
    %v438 = vmul.f32 %v435, %v437
    %v439 = vadd.f32 %v435, %v438
    %vm440 = vweird.f32 %v434
    %vm441 = vweird.f32 %v435
    %vm442 = vmor %vm440, %vm441
    %v443 = vsel %vm442, %v435, %v439
    %v444 = vand.u32 2147483647, %v434
    %vm445 = vcmp.eq.f32.partialorder %v444, 8.507059e+37
    %v446 = vand.u32 %v434, 2147483648
    %v447 = vor.u32 1.1754944e-38, %v446
    %v448 = vsel %vm445, %v447, %v443
    %v449 = vmul.f32 1.0, %v448
    %v450 = vtanh.pop %v392
    %v451 = vmul.f32 %v449, %v306
    %453 = vrot.lane.b32.xlu0 %v450, 64
    %v454 = vpop.permute.xlu0 %453
    %v456 = vmul.f32 %v449, %v454
    %458 = vrot.lane.b32.xlu0 %v456, 32
    %v459 = vpop.permute.xlu0 %458
    %v461 = vadd.f32 %v451, %v459
    %v462 = vtanh.pop %v461
    %464 = vrot.lane.b32.xlu0 %v462, 64
    %v465 = vpop.permute.xlu0 %464
    %v467 = vmul.f32 %v449, %v465
    %v468 = vpack.c.bf16 %v467, %v467
    %s469 = scalar_lea.vmem [#allocation12], 2
    %v470 = vld [vmem:[%s469] sm:$0x3]
    %v471 = vadd.f32 %v470, %v316
    %473 = vrot.lane.b32.xlu0 %v430, 32
    %v474 = vpop.permute.xlu0 %473
    %v476 = vsel %vm205, %v474, 0
    %478 = vmatpush.bf16.msra.mxu0 0
    %479 = vmatpush.bf16.msra.mxu0 0
    %480 = vmatpush.bf16.msra.mxu0 0
    %481 = vmatpush.bf16.msra.mxu0 0
    %482 = vmatpush.bf16.msra.mxu0 0
    %483 = vmatpush.bf16.msra.mxu0 0
    %484 = vmatpush.bf16.msra.mxu0 %v187
    %485 = vmatpush.bf16.msra.mxu0 %v186
    %486 = vmatmul.bf16.gmra.mxu0 %v476
    %v487 = vpop.f32.mrf.mxu0
    %v488 = vadd.f32 0.0, %v487
    %v489 = vpop.f32.mrf.mxu0
    %490 = vdwg.mxu0
    %v491 = vadd.f32 %v471, %v488
    %492 = vst [vmem:[%s469] sm:$0x3] %v491
    %s493 = scalar_lea.vmem [#allocation12], 12
    %v494 = vld [vmem:[%s493] sm:$0x3]
    %496 = vrot.lane.b32.xlu0 %v468, 32
    %v497 = vpop.permute.xlu0 %496
    %v499 = vsel %vm205, %v497, 0
    %501 = vmatpush.bf16.msra.mxu0 0
    %502 = vmatpush.bf16.msra.mxu0 0
    %503 = vmatpush.bf16.msra.mxu0 0
    %504 = vmatpush.bf16.msra.mxu0 0
    %505 = vmatpush.bf16.msra.mxu0 0
    %506 = vmatpush.bf16.msra.mxu0 0
    %507 = vmatpush.bf16.msra.mxu0 %v194
    %508 = vmatpush.bf16.msra.mxu0 %v193
    %509 = vmatmul.bf16.gmra.mxu0 %v499
    %v510 = vpop.f32.mrf.mxu0
    %v511 = vadd.f32 0.0, %v510
    %v512 = vpop.f32.mrf.mxu0
    %513 = vdwg.mxu0
    %v514 = vadd.f32 %v494, %v511
    %515 = vst [vmem:[%s493] sm:$0x3] %v514
    %v516 = vld [vmem:[%s145] sm:$0x3]
    %517 = vmatpush.bf16.msra.mxu0 0
    %518 = vmatpush.bf16.msra.mxu0 0
    %519 = vmatpush.bf16.msra.mxu0 0
    %520 = vmatpush.bf16.msra.mxu0 0
    %521 = vmatpush.bf16.msra.mxu0 0
    %522 = vmatpush.bf16.msra.mxu0 0
    %523 = vmatpush.bf16.msra.mxu0 %v174
    %524 = vmatpush.bf16.msra.mxu0 %v173
    %525 = vmatmul.bf16.gmra.mxu0 %v476
    %v526 = vpop.f32.mrf.mxu0
    %v527 = vadd.f32 0.0, %v526
    %v528 = vpop.f32.mrf.mxu0
    %529 = vdwg.mxu0
    %v530 = vadd.f32 %v516, %v527
    %v531 = vld [vmem:[%s159] sm:$0x3]
    %532 = vmatpush.bf16.msra.mxu0 0
    %533 = vmatpush.bf16.msra.mxu0 0
    %534 = vmatpush.bf16.msra.mxu0 0
    %535 = vmatpush.bf16.msra.mxu0 0
    %536 = vmatpush.bf16.msra.mxu0 0
    %537 = vmatpush.bf16.msra.mxu0 0
    %538 = vmatpush.bf16.msra.mxu0 %v181
    %539 = vmatpush.bf16.msra.mxu0 %v180
    %540 = vmatmul.bf16.gmra.mxu0 %v499
    %v541 = vpop.f32.mrf.mxu0
    %v542 = vadd.f32 0.0, %v541
    %v543 = vpop.f32.mrf.mxu0
    %544 = vdwg.mxu0
    %v545 = vadd.f32 %v531, %v542
    %v546 = vxor.u32 %v530, 2147483648
    %v547 = vmul.f32 %v546, 1.442695
    %v548 = vpow.pop %v547
    %v549 = vadd.f32 %v548, 1.0
    %v550 = vrcp.pop %v549
    %v551 = vmul.f32 %v549, %v550
    %v552 = vsub.f32 1.0, %v551
    %v553 = vmul.f32 %v550, %v552
    %v554 = vadd.f32 %v550, %v553
    %vm555 = vweird.f32 %v549
    %vm556 = vweird.f32 %v550
    %vm557 = vmor %vm555, %vm556
    %v558 = vsel %vm557, %v550, %v554
    %v559 = vand.u32 2147483647, %v549
    %vm560 = vcmp.eq.f32.partialorder %v559, 8.507059e+37
    %v561 = vand.u32 %v549, 2147483648
    %v562 = vor.u32 1.1754944e-38, %v561
    %v563 = vsel %vm560, %v562, %v558
    %v564 = vmul.f32 1.0, %v563
    %v565 = vtanh.pop %v530
    %v566 = vmul.f32 %v564, %v423
    %568 = vrot.lane.b32.xlu0 %v565, 64
    %v569 = vpop.permute.xlu0 %568
    %v571 = vmul.f32 %v564, %v569
    %573 = vrot.lane.b32.xlu0 %v571, 32
    %v574 = vpop.permute.xlu0 %573
    %v576 = vadd.f32 %v566, %v574
    %v577 = vtanh.pop %v576
    %579 = vrot.lane.b32.xlu0 %v577, 64
    %v580 = vpop.permute.xlu0 %579
    %v582 = vmul.f32 %v564, %v580
    %v583 = vpack.c.bf16 %v582, %v582
    %v584 = vxor.u32 %v545, 2147483648
    %v585 = vmul.f32 %v584, 1.442695
    %v586 = vpow.pop %v585
    %v587 = vadd.f32 %v586, 1.0
    %v588 = vrcp.pop %v587
    %v589 = vmul.f32 %v587, %v588
    %v590 = vsub.f32 1.0, %v589
    %v591 = vmul.f32 %v588, %v590
    %v592 = vadd.f32 %v588, %v591
    %vm593 = vweird.f32 %v587
    %vm594 = vweird.f32 %v588
    %vm595 = vmor %vm593, %vm594
    %v596 = vsel %vm595, %v588, %v592
    %v597 = vand.u32 2147483647, %v587
    %vm598 = vcmp.eq.f32.partialorder %v597, 8.507059e+37
    %v599 = vand.u32 %v587, 2147483648
    %v600 = vor.u32 1.1754944e-38, %v599
    %v601 = vsel %vm598, %v600, %v596
    %v602 = vmul.f32 1.0, %v601
    %v603 = vtanh.pop %v545
    %v604 = vmul.f32 %v602, %v461
    %606 = vrot.lane.b32.xlu0 %v603, 64
    %v607 = vpop.permute.xlu0 %606
    %v609 = vmul.f32 %v602, %v607
    %611 = vrot.lane.b32.xlu0 %v609, 32
    %v612 = vpop.permute.xlu0 %611
    %v614 = vadd.f32 %v604, %v612
    %v615 = vtanh.pop %v614
    %617 = vrot.lane.b32.xlu0 %v615, 64
    %v618 = vpop.permute.xlu0 %617
    %v620 = vmul.f32 %v602, %v618
    %v621 = vpack.c.bf16 %v620, %v620
    %s622 = scalar_lea.vmem [#allocation12], 4
    %v623 = vld [vmem:[%s622] sm:$0x3]
    %v624 = vadd.f32 %v623, %v316
    %626 = vrot.lane.b32.xlu0 %v583, 32
    %v627 = vpop.permute.xlu0 %626
    %v629 = vsel %vm205, %v627, 0
    %631 = vmatpush.bf16.msra.mxu0 0
    %632 = vmatpush.bf16.msra.mxu0 0
    %633 = vmatpush.bf16.msra.mxu0 0
    %634 = vmatpush.bf16.msra.mxu0 0
    %635 = vmatpush.bf16.msra.mxu0 0
    %636 = vmatpush.bf16.msra.mxu0 0
    %637 = vmatpush.bf16.msra.mxu0 %v187
    %638 = vmatpush.bf16.msra.mxu0 %v186
    %639 = vmatmul.bf16.gmra.mxu0 %v629
    %v640 = vpop.f32.mrf.mxu0
    %v641 = vadd.f32 0.0, %v640
    %v642 = vpop.f32.mrf.mxu0
    %643 = vdwg.mxu0
    %v644 = vadd.f32 %v624, %v641
    %645 = vst [vmem:[%s622] sm:$0x3] %v644
    %s646 = scalar_lea.vmem [#allocation12], 10
    %v647 = vld [vmem:[%s646] sm:$0x3]
    %649 = vrot.lane.b32.xlu0 %v621, 32
    %v650 = vpop.permute.xlu0 %649
    %v652 = vsel %vm205, %v650, 0
    %654 = vmatpush.bf16.msra.mxu0 0
    %655 = vmatpush.bf16.msra.mxu0 0
    %656 = vmatpush.bf16.msra.mxu0 0
    %657 = vmatpush.bf16.msra.mxu0 0
    %658 = vmatpush.bf16.msra.mxu0 0
    %659 = vmatpush.bf16.msra.mxu0 0
    %660 = vmatpush.bf16.msra.mxu0 %v194
    %661 = vmatpush.bf16.msra.mxu0 %v193
    %662 = vmatmul.bf16.gmra.mxu0 %v652
    %v663 = vpop.f32.mrf.mxu0
    %v664 = vadd.f32 0.0, %v663
    %v665 = vpop.f32.mrf.mxu0
    %666 = vdwg.mxu0
    %v667 = vadd.f32 %v647, %v664
    %668 = vst [vmem:[%s646] sm:$0x3] %v667
    %v669 = vld [vmem:[%s149] sm:$0x3]
    %670 = vmatpush.bf16.msra.mxu0 0
    %671 = vmatpush.bf16.msra.mxu0 0
    %672 = vmatpush.bf16.msra.mxu0 0
    %673 = vmatpush.bf16.msra.mxu0 0
    %674 = vmatpush.bf16.msra.mxu0 0
    %675 = vmatpush.bf16.msra.mxu0 0
    %676 = vmatpush.bf16.msra.mxu0 %v174
    %677 = vmatpush.bf16.msra.mxu0 %v173
    %678 = vmatmul.bf16.gmra.mxu0 %v629
    %v679 = vpop.f32.mrf.mxu0
    %v680 = vadd.f32 0.0, %v679
    %v681 = vpop.f32.mrf.mxu0
    %682 = vdwg.mxu0
    %v683 = vadd.f32 %v669, %v680
    %v684 = vld [vmem:[%s155] sm:$0x3]
    %685 = vmatpush.bf16.msra.mxu0 0
    %686 = vmatpush.bf16.msra.mxu0 0
    %687 = vmatpush.bf16.msra.mxu0 0
    %688 = vmatpush.bf16.msra.mxu0 0
    %689 = vmatpush.bf16.msra.mxu0 0
    %690 = vmatpush.bf16.msra.mxu0 0
    %691 = vmatpush.bf16.msra.mxu0 %v181
    %692 = vmatpush.bf16.msra.mxu0 %v180
    %693 = vmatmul.bf16.gmra.mxu0 %v652
    %v694 = vpop.f32.mrf.mxu0
    %v695 = vadd.f32 0.0, %v694
    %v696 = vpop.f32.mrf.mxu0
    %697 = vdwg.mxu0
    %v698 = vadd.f32 %v684, %v695
    %v699 = vxor.u32 %v683, 2147483648
    %v700 = vmul.f32 %v699, 1.442695
    %v701 = vpow.pop %v700
    %v702 = vadd.f32 %v701, 1.0
    %v703 = vrcp.pop %v702
    %v704 = vmul.f32 %v702, %v703
    %v705 = vsub.f32 1.0, %v704
    %v706 = vmul.f32 %v703, %v705
    %v707 = vadd.f32 %v703, %v706
    %vm708 = vweird.f32 %v702
    %vm709 = vweird.f32 %v703
    %vm710 = vmor %vm708, %vm709
    %v711 = vsel %vm710, %v703, %v707
    %v712 = vand.u32 2147483647, %v702
    %vm713 = vcmp.eq.f32.partialorder %v712, 8.507059e+37
    %v714 = vand.u32 %v702, 2147483648
    %v715 = vor.u32 1.1754944e-38, %v714
    %v716 = vsel %vm713, %v715, %v711
    %v717 = vmul.f32 1.0, %v716
    %v718 = vtanh.pop %v683
    %v719 = vmul.f32 %v717, %v576
    %721 = vrot.lane.b32.xlu0 %v718, 64
    %v722 = vpop.permute.xlu0 %721
    %v724 = vmul.f32 %v717, %v722
    %726 = vrot.lane.b32.xlu0 %v724, 32
    %v727 = vpop.permute.xlu0 %726
    %v729 = vadd.f32 %v719, %v727
    %v730 = vtanh.pop %v729
    %732 = vrot.lane.b32.xlu0 %v730, 64
    %v733 = vpop.permute.xlu0 %732
    %v735 = vmul.f32 %v717, %v733
    %v736 = vpack.c.bf16 %v735, %v735
    %v737 = vxor.u32 %v698, 2147483648
    %v738 = vmul.f32 %v737, 1.442695
    %v739 = vpow.pop %v738
    %v740 = vadd.f32 %v739, 1.0
    %v741 = vrcp.pop %v740
    %v742 = vmul.f32 %v740, %v741
    %v743 = vsub.f32 1.0, %v742
    %v744 = vmul.f32 %v741, %v743
    %v745 = vadd.f32 %v741, %v744
    %vm746 = vweird.f32 %v740
    %vm747 = vweird.f32 %v741
    %vm748 = vmor %vm746, %vm747
    %v749 = vsel %vm748, %v741, %v745
    %v750 = vand.u32 2147483647, %v740
    %vm751 = vcmp.eq.f32.partialorder %v750, 8.507059e+37
    %v752 = vand.u32 %v740, 2147483648
    %v753 = vor.u32 1.1754944e-38, %v752
    %v754 = vsel %vm751, %v753, %v749
    %v755 = vmul.f32 1.0, %v754
    %v756 = vtanh.pop %v698
    %v757 = vmul.f32 %v755, %v614
    %759 = vrot.lane.b32.xlu0 %v756, 64
    %v760 = vpop.permute.xlu0 %759
    %v762 = vmul.f32 %v755, %v760
    %764 = vrot.lane.b32.xlu0 %v762, 32
    %v765 = vpop.permute.xlu0 %764
    %v767 = vadd.f32 %v757, %v765
    %v768 = vtanh.pop %v767
    %770 = vrot.lane.b32.xlu0 %v768, 64
    %v771 = vpop.permute.xlu0 %770
    %v773 = vmul.f32 %v755, %v771
    %v774 = vpack.c.bf16 %v773, %v773
    %s775 = scalar_lea.vmem [#allocation12], 6
    %v776 = vld [vmem:[%s775] sm:$0x3]
    %v777 = vadd.f32 %v776, %v316
    %779 = vrot.lane.b32.xlu0 %v736, 32
    %v780 = vpop.permute.xlu0 %779
    %v782 = vsel %vm205, %v780, 0
    %784 = vmatpush.bf16.msra.mxu0 0
    %785 = vmatpush.bf16.msra.mxu0 0
    %786 = vmatpush.bf16.msra.mxu0 0
    %787 = vmatpush.bf16.msra.mxu0 0
    %788 = vmatpush.bf16.msra.mxu0 0
    %789 = vmatpush.bf16.msra.mxu0 0
    %790 = vmatpush.bf16.msra.mxu0 %v187
    %791 = vmatpush.bf16.msra.mxu0 %v186
    %792 = vmatmul.bf16.gmra.mxu0 %v782
    %v793 = vpop.f32.mrf.mxu0
    %v794 = vadd.f32 0.0, %v793
    %v795 = vpop.f32.mrf.mxu0
    %796 = vdwg.mxu0
    %v797 = vadd.f32 %v777, %v794
    %798 = vst [vmem:[%s775] sm:$0x3] %v797
    %s799 = scalar_lea.vmem [#allocation12], 8
    %v800 = vld [vmem:[%s799] sm:$0x3]
    %802 = vrot.lane.b32.xlu0 %v774, 32
    %v803 = vpop.permute.xlu0 %802
    %v805 = vsel %vm205, %v803, 0
    %807 = vmatpush.bf16.msra.mxu0 0
    %808 = vmatpush.bf16.msra.mxu0 0
    %809 = vmatpush.bf16.msra.mxu0 0
    %810 = vmatpush.bf16.msra.mxu0 0
    %811 = vmatpush.bf16.msra.mxu0 0
    %812 = vmatpush.bf16.msra.mxu0 0
    %813 = vmatpush.bf16.msra.mxu0 %v194
    %814 = vmatpush.bf16.msra.mxu0 %v193
    %815 = vmatmul.bf16.gmra.mxu0 %v805
    %v816 = vpop.f32.mrf.mxu0
    %v817 = vadd.f32 0.0, %v816
    %v818 = vpop.f32.mrf.mxu0
    %819 = vdwg.mxu0
    %v820 = vadd.f32 %v800, %v817
    %821 = vst [vmem:[%s799] sm:$0x3] %v820
    %v822 = vld [vmem:[%s153] sm:$0x3]
    %823 = vmatpush.bf16.msra.mxu0 0
    %824 = vmatpush.bf16.msra.mxu0 0
    %825 = vmatpush.bf16.msra.mxu0 0
    %826 = vmatpush.bf16.msra.mxu0 0
    %827 = vmatpush.bf16.msra.mxu0 0
    %828 = vmatpush.bf16.msra.mxu0 0
    %829 = vmatpush.bf16.msra.mxu0 %v174
    %830 = vmatpush.bf16.msra.mxu0 %v173
    %831 = vmatmul.bf16.gmra.mxu0 %v782
    %v832 = vpop.f32.mrf.mxu0
    %v833 = vadd.f32 0.0, %v832
    %v834 = vpop.f32.mrf.mxu0
    %835 = vdwg.mxu0
    %v836 = vadd.f32 %v822, %v833
    %v837 = vld [vmem:[%s151] sm:$0x3]
    %838 = vmatpush.bf16.msra.mxu0 0
    %839 = vmatpush.bf16.msra.mxu0 0
    %840 = vmatpush.bf16.msra.mxu0 0
    %841 = vmatpush.bf16.msra.mxu0 0
    %842 = vmatpush.bf16.msra.mxu0 0
    %843 = vmatpush.bf16.msra.mxu0 0
    %844 = vmatpush.bf16.msra.mxu0 %v181
    %845 = vmatpush.bf16.msra.mxu0 %v180
    %846 = vmatmul.bf16.gmra.mxu0 %v805
    %v847 = vpop.f32.mrf.mxu0
    %v848 = vadd.f32 0.0, %v847
    %v849 = vpop.f32.mrf.mxu0
    %850 = vdwg.mxu0
    %v851 = vadd.f32 %v837, %v848
    %v852 = vxor.u32 %v836, 2147483648
    %v853 = vmul.f32 %v852, 1.442695
    %v854 = vpow.pop %v853
    %v855 = vadd.f32 %v854, 1.0
    %v856 = vrcp.pop %v855
    %v857 = vmul.f32 %v855, %v856
    %v858 = vsub.f32 1.0, %v857
    %v859 = vmul.f32 %v856, %v858
    %v860 = vadd.f32 %v856, %v859
    %vm861 = vweird.f32 %v855
    %vm862 = vweird.f32 %v856
    %vm863 = vmor %vm861, %vm862
    %v864 = vsel %vm863, %v856, %v860
    %v865 = vand.u32 2147483647, %v855
    %vm866 = vcmp.eq.f32.partialorder %v865, 8.507059e+37
    %v867 = vand.u32 %v855, 2147483648
    %v868 = vor.u32 1.1754944e-38, %v867
    %v869 = vsel %vm866, %v868, %v864
    %v870 = vmul.f32 1.0, %v869
    %v871 = vtanh.pop %v836
    %v872 = vmul.f32 %v870, %v729
    %874 = vrot.lane.b32.xlu0 %v871, 64
    %v875 = vpop.permute.xlu0 %874
    %v877 = vmul.f32 %v870, %v875
    %879 = vrot.lane.b32.xlu0 %v877, 32
    %v880 = vpop.permute.xlu0 %879
    %v882 = vadd.f32 %v872, %v880
    %v883 = vtanh.pop %v882
    %885 = vrot.lane.b32.xlu0 %v883, 64
    %v886 = vpop.permute.xlu0 %885
    %v888 = vmul.f32 %v870, %v886
    %v889 = vpack.c.bf16 %v888, %v888
    %v890 = vxor.u32 %v851, 2147483648
    %v891 = vmul.f32 %v890, 1.442695
    %v892 = vpow.pop %v891
    %v893 = vadd.f32 %v892, 1.0
    %v894 = vrcp.pop %v893
    %v895 = vmul.f32 %v893, %v894
    %v896 = vsub.f32 1.0, %v895
    %v897 = vmul.f32 %v894, %v896
    %v898 = vadd.f32 %v894, %v897
    %vm899 = vweird.f32 %v893
    %vm900 = vweird.f32 %v894
    %vm901 = vmor %vm899, %vm900
    %v902 = vsel %vm901, %v894, %v898
    %v903 = vand.u32 2147483647, %v893
    %vm904 = vcmp.eq.f32.partialorder %v903, 8.507059e+37
    %v905 = vand.u32 %v893, 2147483648
    %v906 = vor.u32 1.1754944e-38, %v905
    %v907 = vsel %vm904, %v906, %v902
    %v908 = vmul.f32 1.0, %v907
    %v909 = vtanh.pop %v851
    %v910 = vmul.f32 %v908, %v767
    %912 = vrot.lane.b32.xlu0 %v909, 64
    %v913 = vpop.permute.xlu0 %912
    %v915 = vmul.f32 %v908, %v913
    %917 = vrot.lane.b32.xlu0 %v915, 32
    %v918 = vpop.permute.xlu0 %917
    %v920 = vadd.f32 %v910, %v918
    %v921 = vtanh.pop %v920
    %923 = vrot.lane.b32.xlu0 %v921, 64
    %v924 = vpop.permute.xlu0 %923
    %v926 = vmul.f32 %v908, %v924
    %v927 = vpack.c.bf16 %v926, %v926
    %v928 = vld [vmem:[%s799] sm:$0x3]
    %v929 = vadd.f32 %v928, %v316
    %931 = vrot.lane.b32.xlu0 %v889, 32
    %v932 = vpop.permute.xlu0 %931
    %v934 = vsel %vm205, %v932, 0
    %936 = vmatpush.bf16.msra.mxu0 0
    %937 = vmatpush.bf16.msra.mxu0 0
    %938 = vmatpush.bf16.msra.mxu0 0
    %939 = vmatpush.bf16.msra.mxu0 0
    %940 = vmatpush.bf16.msra.mxu0 0
    %941 = vmatpush.bf16.msra.mxu0 0
    %942 = vmatpush.bf16.msra.mxu0 %v187
    %943 = vmatpush.bf16.msra.mxu0 %v186
    %944 = vmatmul.bf16.gmra.mxu0 %v934
    %v945 = vpop.f32.mrf.mxu0
    %v946 = vadd.f32 0.0, %v945
    %v947 = vpop.f32.mrf.mxu0
    %948 = vdwg.mxu0
    %v949 = vadd.f32 %v929, %v946
    %950 = vst [vmem:[%s799] sm:$0x3] %v949
    %v951 = vld [vmem:[%s775] sm:$0x3]
    %953 = vrot.lane.b32.xlu0 %v927, 32
    %v954 = vpop.permute.xlu0 %953
    %v956 = vsel %vm205, %v954, 0
    %958 = vmatpush.bf16.msra.mxu0 0
    %959 = vmatpush.bf16.msra.mxu0 0
    %960 = vmatpush.bf16.msra.mxu0 0
    %961 = vmatpush.bf16.msra.mxu0 0
    %962 = vmatpush.bf16.msra.mxu0 0
    %963 = vmatpush.bf16.msra.mxu0 0
    %964 = vmatpush.bf16.msra.mxu0 %v194
    %965 = vmatpush.bf16.msra.mxu0 %v193
    %966 = vmatmul.bf16.gmra.mxu0 %v956
    %v967 = vpop.f32.mrf.mxu0
    %v968 = vadd.f32 0.0, %v967
    %v969 = vpop.f32.mrf.mxu0
    %970 = vdwg.mxu0
    %v971 = vadd.f32 %v951, %v968
    %972 = vst [vmem:[%s775] sm:$0x3] %v971
    %v973 = vld [vmem:[%s157] sm:$0x3]
    %974 = vmatpush.bf16.msra.mxu0 0
    %975 = vmatpush.bf16.msra.mxu0 0
    %976 = vmatpush.bf16.msra.mxu0 0
    %977 = vmatpush.bf16.msra.mxu0 0
    %978 = vmatpush.bf16.msra.mxu0 0
    %979 = vmatpush.bf16.msra.mxu0 0
    %980 = vmatpush.bf16.msra.mxu0 %v174
    %981 = vmatpush.bf16.msra.mxu0 %v173
    %982 = vmatmul.bf16.gmra.mxu0 %v934
    %v983 = vpop.f32.mrf.mxu0
    %v984 = vadd.f32 0.0, %v983
    %v985 = vpop.f32.mrf.mxu0
    %986 = vdwg.mxu0
    %v987 = vadd.f32 %v973, %v984
    %v988 = vld [vmem:[%s147] sm:$0x3]
    %989 = vmatpush.bf16.msra.mxu0 0
    %990 = vmatpush.bf16.msra.mxu0 0
    %991 = vmatpush.bf16.msra.mxu0 0
    %992 = vmatpush.bf16.msra.mxu0 0
    %993 = vmatpush.bf16.msra.mxu0 0
    %994 = vmatpush.bf16.msra.mxu0 0
    %995 = vmatpush.bf16.msra.mxu0 %v181
    %996 = vmatpush.bf16.msra.mxu0 %v180
    %997 = vmatmul.bf16.gmra.mxu0 %v956
    %v998 = vpop.f32.mrf.mxu0
    %v999 = vadd.f32 0.0, %v998
    %v1000 = vpop.f32.mrf.mxu0
    %1001 = vdwg.mxu0
    %v1002 = vadd.f32 %v988, %v999
    %v1003 = vxor.u32 %v987, 2147483648
    %v1004 = vmul.f32 %v1003, 1.442695
    %v1005 = vpow.pop %v1004
    %v1006 = vadd.f32 %v1005, 1.0
    %v1007 = vrcp.pop %v1006
    %v1008 = vmul.f32 %v1006, %v1007
    %v1009 = vsub.f32 1.0, %v1008
    %v1010 = vmul.f32 %v1007, %v1009
    %v1011 = vadd.f32 %v1007, %v1010
    %vm1012 = vweird.f32 %v1006
    %vm1013 = vweird.f32 %v1007
    %vm1014 = vmor %vm1012, %vm1013
    %v1015 = vsel %vm1014, %v1007, %v1011
    %v1016 = vand.u32 2147483647, %v1006
    %vm1017 = vcmp.eq.f32.partialorder %v1016, 8.507059e+37
    %v1018 = vand.u32 %v1006, 2147483648
    %v1019 = vor.u32 1.1754944e-38, %v1018
    %v1020 = vsel %vm1017, %v1019, %v1015
    %v1021 = vmul.f32 1.0, %v1020
    %v1022 = vtanh.pop %v987
    %v1023 = vmul.f32 %v1021, %v882
    %1025 = vrot.lane.b32.xlu0 %v1022, 64
    %v1026 = vpop.permute.xlu0 %1025
    %v1028 = vmul.f32 %v1021, %v1026
    %1030 = vrot.lane.b32.xlu0 %v1028, 32
    %v1031 = vpop.permute.xlu0 %1030
    %v1033 = vadd.f32 %v1023, %v1031
    %v1034 = vtanh.pop %v1033
    %1036 = vrot.lane.b32.xlu0 %v1034, 64
    %v1037 = vpop.permute.xlu0 %1036
    %v1039 = vmul.f32 %v1021, %v1037
    %v1040 = vpack.c.bf16 %v1039, %v1039
    %v1041 = vxor.u32 %v1002, 2147483648
    %v1042 = vmul.f32 %v1041, 1.442695
    %v1043 = vpow.pop %v1042
    %v1044 = vadd.f32 %v1043, 1.0
    %v1045 = vrcp.pop %v1044
    %v1046 = vmul.f32 %v1044, %v1045
    %v1047 = vsub.f32 1.0, %v1046
    %v1048 = vmul.f32 %v1045, %v1047
    %v1049 = vadd.f32 %v1045, %v1048
    %vm1050 = vweird.f32 %v1044
    %vm1051 = vweird.f32 %v1045
    %vm1052 = vmor %vm1050, %vm1051
    %v1053 = vsel %vm1052, %v1045, %v1049
    %v1054 = vand.u32 2147483647, %v1044
    %vm1055 = vcmp.eq.f32.partialorder %v1054, 8.507059e+37
    %v1056 = vand.u32 %v1044, 2147483648
    %v1057 = vor.u32 1.1754944e-38, %v1056
    %v1058 = vsel %vm1055, %v1057, %v1053
    %v1059 = vmul.f32 1.0, %v1058
    %v1060 = vtanh.pop %v1002
    %v1061 = vmul.f32 %v1059, %v920
    %1063 = vrot.lane.b32.xlu0 %v1060, 64
    %v1064 = vpop.permute.xlu0 %1063
    %v1066 = vmul.f32 %v1059, %v1064
    %1068 = vrot.lane.b32.xlu0 %v1066, 32
    %v1069 = vpop.permute.xlu0 %1068
    %v1071 = vadd.f32 %v1061, %v1069
    %v1072 = vtanh.pop %v1071
    %1074 = vrot.lane.b32.xlu0 %v1072, 64
    %v1075 = vpop.permute.xlu0 %1074
    %v1077 = vmul.f32 %v1059, %v1075
    %v1078 = vpack.c.bf16 %v1077, %v1077
    %v1079 = vld [vmem:[%s646] sm:$0x3]
    %v1080 = vadd.f32 %v1079, %v316
    %1082 = vrot.lane.b32.xlu0 %v1040, 32
    %v1083 = vpop.permute.xlu0 %1082
    %v1085 = vsel %vm205, %v1083, 0
    %1087 = vmatpush.bf16.msra.mxu0 0
    %1088 = vmatpush.bf16.msra.mxu0 0
    %1089 = vmatpush.bf16.msra.mxu0 0
    %1090 = vmatpush.bf16.msra.mxu0 0
    %1091 = vmatpush.bf16.msra.mxu0 0
    %1092 = vmatpush.bf16.msra.mxu0 0
    %1093 = vmatpush.bf16.msra.mxu0 %v187
    %1094 = vmatpush.bf16.msra.mxu0 %v186
    %1095 = vmatmul.bf16.gmra.mxu0 %v1085
    %v1096 = vpop.f32.mrf.mxu0
    %v1097 = vadd.f32 0.0, %v1096
    %v1098 = vpop.f32.mrf.mxu0
    %1099 = vdwg.mxu0
    %v1100 = vadd.f32 %v1080, %v1097
    %1101 = vst [vmem:[%s646] sm:$0x3] %v1100
    %v1102 = vld [vmem:[%s622] sm:$0x3]
    %1104 = vrot.lane.b32.xlu0 %v1078, 32
    %v1105 = vpop.permute.xlu0 %1104
    %v1107 = vsel %vm205, %v1105, 0
    %1109 = vmatpush.bf16.msra.mxu0 0
    %1110 = vmatpush.bf16.msra.mxu0 0
    %1111 = vmatpush.bf16.msra.mxu0 0
    %1112 = vmatpush.bf16.msra.mxu0 0
    %1113 = vmatpush.bf16.msra.mxu0 0
    %1114 = vmatpush.bf16.msra.mxu0 0
    %1115 = vmatpush.bf16.msra.mxu0 %v194
    %1116 = vmatpush.bf16.msra.mxu0 %v193
    %1117 = vmatmul.bf16.gmra.mxu0 %v1107
    %v1118 = vpop.f32.mrf.mxu0
    %v1119 = vadd.f32 0.0, %v1118
    %v1120 = vpop.f32.mrf.mxu0
    %1121 = vdwg.mxu0
    %v1122 = vadd.f32 %v1102, %v1119
    %1123 = vst [vmem:[%s622] sm:$0x3] %v1122
    %v1124 = vld [vmem:[%s161] sm:$0x3]
    %1125 = vmatpush.bf16.msra.mxu0 0
    %1126 = vmatpush.bf16.msra.mxu0 0
    %1127 = vmatpush.bf16.msra.mxu0 0
    %1128 = vmatpush.bf16.msra.mxu0 0
    %1129 = vmatpush.bf16.msra.mxu0 0
    %1130 = vmatpush.bf16.msra.mxu0 0
    %1131 = vmatpush.bf16.msra.mxu0 %v174
    %1132 = vmatpush.bf16.msra.mxu0 %v173
    %1133 = vmatmul.bf16.gmra.mxu0 %v1085
    %v1134 = vpop.f32.mrf.mxu0
    %v1135 = vadd.f32 0.0, %v1134
    %v1136 = vpop.f32.mrf.mxu0
    %1137 = vdwg.mxu0
    %v1138 = vadd.f32 %v1124, %v1135
    %v1139 = vld [vmem:[%s143] sm:$0x3]
    %1140 = vmatpush.bf16.msra.mxu0 0
    %1141 = vmatpush.bf16.msra.mxu0 0
    %1142 = vmatpush.bf16.msra.mxu0 0
    %1143 = vmatpush.bf16.msra.mxu0 0
    %1144 = vmatpush.bf16.msra.mxu0 0
    %1145 = vmatpush.bf16.msra.mxu0 0
    %1146 = vmatpush.bf16.msra.mxu0 %v181
    %1147 = vmatpush.bf16.msra.mxu0 %v180
    %1148 = vmatmul.bf16.gmra.mxu0 %v1107
    %v1149 = vpop.f32.mrf.mxu0
    %v1150 = vadd.f32 0.0, %v1149
    %v1151 = vpop.f32.mrf.mxu0
    %1152 = vdwg.mxu0
    %v1153 = vadd.f32 %v1139, %v1150
    %v1154 = vxor.u32 %v1138, 2147483648
    %v1155 = vmul.f32 %v1154, 1.442695
    %v1156 = vpow.pop %v1155
    %v1157 = vadd.f32 %v1156, 1.0
    %v1158 = vrcp.pop %v1157
    %v1159 = vmul.f32 %v1157, %v1158
    %v1160 = vsub.f32 1.0, %v1159
    %v1161 = vmul.f32 %v1158, %v1160
    %v1162 = vadd.f32 %v1158, %v1161
    %vm1163 = vweird.f32 %v1157
    %vm1164 = vweird.f32 %v1158
    %vm1165 = vmor %vm1163, %vm1164
    %v1166 = vsel %vm1165, %v1158, %v1162
    %v1167 = vand.u32 2147483647, %v1157
    %vm1168 = vcmp.eq.f32.partialorder %v1167, 8.507059e+37
    %v1169 = vand.u32 %v1157, 2147483648
    %v1170 = vor.u32 1.1754944e-38, %v1169
    %v1171 = vsel %vm1168, %v1170, %v1166
    %v1172 = vmul.f32 1.0, %v1171
    %v1173 = vtanh.pop %v1138
    %v1174 = vmul.f32 %v1172, %v1033
    %1176 = vrot.lane.b32.xlu0 %v1173, 64
    %v1177 = vpop.permute.xlu0 %1176
    %v1179 = vmul.f32 %v1172, %v1177
    %1181 = vrot.lane.b32.xlu0 %v1179, 32
    %v1182 = vpop.permute.xlu0 %1181
    %v1184 = vadd.f32 %v1174, %v1182
    %v1185 = vtanh.pop %v1184
    %1187 = vrot.lane.b32.xlu0 %v1185, 64
    %v1188 = vpop.permute.xlu0 %1187
    %v1190 = vmul.f32 %v1172, %v1188
    %v1191 = vpack.c.bf16 %v1190, %v1190
    %v1192 = vxor.u32 %v1153, 2147483648
    %v1193 = vmul.f32 %v1192, 1.442695
    %v1194 = vpow.pop %v1193
    %v1195 = vadd.f32 %v1194, 1.0
    %v1196 = vrcp.pop %v1195
    %v1197 = vmul.f32 %v1195, %v1196
    %v1198 = vsub.f32 1.0, %v1197
    %v1199 = vmul.f32 %v1196, %v1198
    %v1200 = vadd.f32 %v1196, %v1199
    %vm1201 = vweird.f32 %v1195
    %vm1202 = vweird.f32 %v1196
    %vm1203 = vmor %vm1201, %vm1202
    %v1204 = vsel %vm1203, %v1196, %v1200
    %v1205 = vand.u32 2147483647, %v1195
    %vm1206 = vcmp.eq.f32.partialorder %v1205, 8.507059e+37
    %v1207 = vand.u32 %v1195, 2147483648
    %v1208 = vor.u32 1.1754944e-38, %v1207
    %v1209 = vsel %vm1206, %v1208, %v1204
    %v1210 = vmul.f32 1.0, %v1209
    %v1211 = vtanh.pop %v1153
    %v1212 = vmul.f32 %v1210, %v1071
    %1214 = vrot.lane.b32.xlu0 %v1211, 64
    %v1215 = vpop.permute.xlu0 %1214
    %v1217 = vmul.f32 %v1210, %v1215
    %1219 = vrot.lane.b32.xlu0 %v1217, 32
    %v1220 = vpop.permute.xlu0 %1219
    %v1222 = vadd.f32 %v1212, %v1220
    %v1223 = vtanh.pop %v1222
    %1225 = vrot.lane.b32.xlu0 %v1223, 64
    %v1226 = vpop.permute.xlu0 %1225
    %v1228 = vmul.f32 %v1210, %v1226
    %v1229 = vpack.c.bf16 %v1228, %v1228
    %v1230 = vld [vmem:[%s493] sm:$0x3]
    %v1231 = vadd.f32 %v1230, %v316
    %1233 = vrot.lane.b32.xlu0 %v1191, 32
    %v1234 = vpop.permute.xlu0 %1233
    %v1236 = vsel %vm205, %v1234, 0
    %1238 = vmatpush.bf16.msra.mxu0 0
    %1239 = vmatpush.bf16.msra.mxu0 0
    %1240 = vmatpush.bf16.msra.mxu0 0
    %1241 = vmatpush.bf16.msra.mxu0 0
    %1242 = vmatpush.bf16.msra.mxu0 0
    %1243 = vmatpush.bf16.msra.mxu0 0
    %1244 = vmatpush.bf16.msra.mxu0 %v187
    %1245 = vmatpush.bf16.msra.mxu0 %v186
    %1246 = vmatmul.bf16.gmra.mxu0 %v1236
    %v1247 = vpop.f32.mrf.mxu0
    %v1248 = vadd.f32 0.0, %v1247
    %v1249 = vpop.f32.mrf.mxu0
    %1250 = vdwg.mxu0
    %v1251 = vadd.f32 %v1231, %v1248
    %1252 = vst [vmem:[%s493] sm:$0x3] %v1251
    %v1253 = vld [vmem:[%s469] sm:$0x3]
    %1255 = vrot.lane.b32.xlu0 %v1229, 32
    %v1256 = vpop.permute.xlu0 %1255
    %v1258 = vsel %vm205, %v1256, 0
    %1260 = vmatpush.bf16.msra.mxu0 0
    %1261 = vmatpush.bf16.msra.mxu0 0
    %1262 = vmatpush.bf16.msra.mxu0 0
    %1263 = vmatpush.bf16.msra.mxu0 0
    %1264 = vmatpush.bf16.msra.mxu0 0
    %1265 = vmatpush.bf16.msra.mxu0 0
    %1266 = vmatpush.bf16.msra.mxu0 %v194
    %1267 = vmatpush.bf16.msra.mxu0 %v193
    %1268 = vmatmul.bf16.gmra.mxu0 %v1258
    %v1269 = vpop.f32.mrf.mxu0
    %v1270 = vadd.f32 0.0, %v1269
    %v1271 = vpop.f32.mrf.mxu0
    %1272 = vdwg.mxu0
    %v1273 = vadd.f32 %v1253, %v1270
    %1274 = vst [vmem:[%s469] sm:$0x3] %v1273
    %v1275 = vld [vmem:[%s165] sm:$0x3]
    %1276 = vmatpush.bf16.msra.mxu0 0
    %1277 = vmatpush.bf16.msra.mxu0 0
    %1278 = vmatpush.bf16.msra.mxu0 0
    %1279 = vmatpush.bf16.msra.mxu0 0
    %1280 = vmatpush.bf16.msra.mxu0 0
    %1281 = vmatpush.bf16.msra.mxu0 0
    %1282 = vmatpush.bf16.msra.mxu0 %v174
    %1283 = vmatpush.bf16.msra.mxu0 %v173
    %1284 = vmatmul.bf16.gmra.mxu0 %v1236
    %v1285 = vpop.f32.mrf.mxu0
    %v1286 = vadd.f32 0.0, %v1285
    %v1287 = vpop.f32.mrf.mxu0
    %1288 = vdwg.mxu0
    %v1289 = vadd.f32 %v1275, %v1286
    %v1290 = vld [vmem:[#allocation3] sm:$0x3]
    %1291 = vmatpush.bf16.msra.mxu0 0
    %1292 = vmatpush.bf16.msra.mxu0 0
    %1293 = vmatpush.bf16.msra.mxu0 0
    %1294 = vmatpush.bf16.msra.mxu0 0
    %1295 = vmatpush.bf16.msra.mxu0 0
    %1296 = vmatpush.bf16.msra.mxu0 0
    %1297 = vmatpush.bf16.msra.mxu0 %v181
    %1298 = vmatpush.bf16.msra.mxu0 %v180
    %1299 = vmatmul.bf16.gmra.mxu0 %v1258
    %v1300 = vpop.f32.mrf.mxu0
    %v1301 = vadd.f32 0.0, %v1300
    %v1302 = vpop.f32.mrf.mxu0
    %1303 = vdwg.mxu0
    %v1304 = vadd.f32 %v1290, %v1301
    %v1305 = vxor.u32 %v1289, 2147483648
    %v1306 = vmul.f32 %v1305, 1.442695
    %v1307 = vpow.pop %v1306
    %v1308 = vadd.f32 %v1307, 1.0
    %v1309 = vrcp.pop %v1308
    %v1310 = vmul.f32 %v1308, %v1309
    %v1311 = vsub.f32 1.0, %v1310
    %v1312 = vmul.f32 %v1309, %v1311
    %v1313 = vadd.f32 %v1309, %v1312
    %vm1314 = vweird.f32 %v1308
    %vm1315 = vweird.f32 %v1309
    %vm1316 = vmor %vm1314, %vm1315
    %v1317 = vsel %vm1316, %v1309, %v1313
    %v1318 = vand.u32 2147483647, %v1308
    %vm1319 = vcmp.eq.f32.partialorder %v1318, 8.507059e+37
    %v1320 = vand.u32 %v1308, 2147483648
    %v1321 = vor.u32 1.1754944e-38, %v1320
    %v1322 = vsel %vm1319, %v1321, %v1317
    %v1323 = vmul.f32 1.0, %v1322
    %v1324 = vtanh.pop %v1289
    %v1325 = vmul.f32 %v1323, %v1184
    %1327 = vrot.lane.b32.xlu0 %v1324, 64
    %v1328 = vpop.permute.xlu0 %1327
    %v1330 = vmul.f32 %v1323, %v1328
    %1332 = vrot.lane.b32.xlu0 %v1330, 32
    %v1333 = vpop.permute.xlu0 %1332
    %v1335 = vadd.f32 %v1325, %v1333
    %v1336 = vtanh.pop %v1335
    %1338 = vrot.lane.b32.xlu0 %v1336, 64
    %v1339 = vpop.permute.xlu0 %1338
    %v1341 = vmul.f32 %v1323, %v1339
    %v1342 = vpack.c.bf16 %v1341, %v1341
    %v1343 = vxor.u32 %v1304, 2147483648
    %v1344 = vmul.f32 %v1343, 1.442695
    %v1345 = vpow.pop %v1344
    %v1346 = vadd.f32 %v1345, 1.0
    %v1347 = vrcp.pop %v1346
    %v1348 = vmul.f32 %v1346, %v1347
    %v1349 = vsub.f32 1.0, %v1348
    %v1350 = vmul.f32 %v1347, %v1349
    %v1351 = vadd.f32 %v1347, %v1350
    %vm1352 = vweird.f32 %v1346
    %vm1353 = vweird.f32 %v1347
    %vm1354 = vmor %vm1352, %vm1353
    %v1355 = vsel %vm1354, %v1347, %v1351
    %v1356 = vand.u32 2147483647, %v1346
    %vm1357 = vcmp.eq.f32.partialorder %v1356, 8.507059e+37
    %v1358 = vand.u32 %v1346, 2147483648
    %v1359 = vor.u32 1.1754944e-38, %v1358
    %v1360 = vsel %vm1357, %v1359, %v1355
    %v1361 = vmul.f32 1.0, %v1360
    %v1362 = vtanh.pop %v1304
    %v1363 = vmul.f32 %v1361, %v1222
    %1365 = vrot.lane.b32.xlu0 %v1362, 64
    %v1366 = vpop.permute.xlu0 %1365
    %v1368 = vmul.f32 %v1361, %v1366
    %1370 = vrot.lane.b32.xlu0 %v1368, 32
    %v1371 = vpop.permute.xlu0 %1370
    %v1373 = vadd.f32 %v1363, %v1371
    %v1374 = vtanh.pop %v1373
    %1376 = vrot.lane.b32.xlu0 %v1374, 64
    %v1377 = vpop.permute.xlu0 %1376
    %v1379 = vmul.f32 %v1361, %v1377
    %v1380 = vpack.c.bf16 %v1379, %v1379
    %v1381 = vld [vmem:[%s340] sm:$0x3]
    %v1382 = vadd.f32 %v1381, %v316
    %1384 = vrot.lane.b32.xlu0 %v1342, 32
    %v1385 = vpop.permute.xlu0 %1384
    %v1387 = vsel %vm205, %v1385, 0
    %1389 = vmatpush.bf16.msra.mxu0 0
    %1390 = vmatpush.bf16.msra.mxu0 0
    %1391 = vmatpush.bf16.msra.mxu0 0
    %1392 = vmatpush.bf16.msra.mxu0 0
    %1393 = vmatpush.bf16.msra.mxu0 0
    %1394 = vmatpush.bf16.msra.mxu0 0
    %1395 = vmatpush.bf16.msra.mxu0 %v187
    %1396 = vmatpush.bf16.msra.mxu0 %v186
    %1397 = vmatmul.bf16.gmra.mxu0 %v1387
    %v1398 = vpop.f32.mrf.mxu0
    %v1399 = vadd.f32 0.0, %v1398
    %v1400 = vpop.f32.mrf.mxu0
    %1401 = vdwg.mxu0
    %v1402 = vadd.f32 %v1382, %v1399
    %1403 = vst [vmem:[%s340] sm:$0x3] %v1402
    %v1404 = vld [vmem:[#allocation12] sm:$0x3]
    %1406 = vrot.lane.b32.xlu0 %v1380, 32
    %v1407 = vpop.permute.xlu0 %1406
    %v1409 = vsel %vm205, %v1407, 0
    %1411 = vmatpush.bf16.msra.mxu0 0
    %1412 = vmatpush.bf16.msra.mxu0 0
    %1413 = vmatpush.bf16.msra.mxu0 0
    %1414 = vmatpush.bf16.msra.mxu0 0
    %1415 = vmatpush.bf16.msra.mxu0 0
    %1416 = vmatpush.bf16.msra.mxu0 0
    %1417 = vmatpush.bf16.msra.mxu0 %v194
    %1418 = vmatpush.bf16.msra.mxu0 %v193
    %1419 = vmatmul.bf16.gmra.mxu0 %v1409
    %v1420 = vpop.f32.mrf.mxu0
    %v1421 = vadd.f32 0.0, %v1420
    %v1422 = vpop.f32.mrf.mxu0
    %1423 = vdwg.mxu0
    %v1424 = vadd.f32 %v1404, %v1421
    %1425 = vst [vmem:[#allocation12] sm:$0x3] %v1424
    // Predicated region
    $region42: #{tpu_custom_call.1} parent=1 // pred_check
      _
    $region43: #{tpu_custom_call.1} parent=1 // pred_check_branch
      %1427 = sbr.rel (0) target = $region45
    $region44: #{tpu_custom_call.1} parent=1 // pred_region
      %1429 = vsyncadd [#allocation6], 0
      %s1430 = sshll.u32 [#allocation12], 4
      %s1431 = int_to_ptr.vmem [resolvable:$true] %s1430
      %s1432 = sshll.u32 %s6, 4
      %s1433 = int_to_ptr.hbm [resolvable:$true] %s1432
      %1438 = dma.vmem_to_hbm [thread:$0]  %s1431, 256, %s1433, [#allocation6], 32, 32, 2
    $region45: #{tpu_custom_call.1} parent=1 // pred_fallthru
      _
    // Predicated region
    $region46: #{tpu_custom_call.1} parent=1 // pred_check
      _
    $region47: #{tpu_custom_call.1} parent=1 // pred_check_branch
      %1440 = sbr.rel (0) target = $region49
    $region48: #{tpu_custom_call.1} parent=1 // pred_region
      %1442 = dma.done [#allocation6], 256
    $region49: #{tpu_custom_call.1} parent=1 // pred_fallthru
      _
    %1443 = vsyncpa [#allocation5], 1
    %1444 = vsyncpa [#allocation8], 1
    %1445 = vsyncpa [#allocation11], 1
    %1446 = vsyncpa [#allocation6], 1

</llo_original>
